<compile_context>
chip_gen: v7x
topology: tpu7x:2x2x1
jax: 0.10.0
libtpu: 0.0.40
codegen_flags: <defaults>
</compile_context>

<pallas_src>
import functools

import jax
import jax.numpy as jnp
from jax.experimental import pallas as pl
from jax.experimental.pallas import tpu as pltpu


def _channel_attention_kernel(
    x_ref,      # (1, C, HW)  input block, spatial in lanes (f32)
    w1_ref,     # (C, 9C)     process conv1 weight, im2col-flattened (bf16)
    b1_ref,     # (C, 1)      f32
    w2_ref,     # (C, 9C)     process conv2 weight (bf16)
    b2_ref,     # (C, 1)      f32
    wd1_ref,    # (C, Cr)     conv_du 1x1 #1 weight  (c_in, c_out)
    bd1_ref,    # (1, Cr)
    wd2t_ref,   # (C, Cr)     conv_du 1x1 #2 weight, pre-transposed (c_out, c_in)
    bd2_ref,    # (C, 1)
    out_ref,    # (1, C, HW)
    pad0_ref,   # (C, (H+2)W) bf16  dx=0  column copy of x, zero halo rows
    padm_ref,   # (C, (H+2)W) bf16  dx=-1 column-shifted copy
    padp_ref,   # (C, (H+2)W) bf16  dx=+1 column-shifted copy
    h1p_ref,    # (C, (H+2)W) bf16  conv1 output (padded) == dx=0 copy for conv2
    res_ref,    # (C, HW)     f32   conv2 output
    *, H, W, BH,
):
    HW = H * W
    C = x_ref.shape[1]
    n_bands = H // BH
    BL = BH * W                          # lanes per band
    f32, bf16 = jnp.float32, jnp.bfloat16

    # ---- hoisted column-halo masks (shared by both convs / all bands) -------
    col = jax.lax.broadcasted_iota(jnp.int32, (1, HW), 1) % W
    mask_l = col >= 1                    # valid output columns for a dx=-1 tap
    mask_r = col <= W - 2                # valid output columns for a dx=+1 tap

    zrow = jnp.zeros((C, W), bf16)

    def fill_padded(dst_ref, interior_f32):
        """dst = [zero row | interior (cast to bf16) | zero row] along lanes."""
        dst_ref[:, 0:W] = zrow
        dst_ref[:, W:W + HW] = interior_f32.astype(bf16)
        dst_ref[:, W + HW:] = zrow

    def build_colshifts(src_f32):
        """Fill padm/padp with the dx=-1 / dx=+1 column-shifted copies of src.

        Rolls are done on the lane-aligned (C, HW) layout in f32 (safe on all
        generations); the wrap lanes are exactly the column-masked ones.
        """
        fill_padded(padm_ref,
                    jnp.where(mask_l, pltpu.roll(src_f32, shift=1, axis=1), 0.0))
        fill_padded(padp_ref,
                    jnp.where(mask_r, pltpu.roll(src_f32, shift=HW - 1, axis=1), 0.0))

    def conv3x3_banded(w_ref, b_ref, cs0_ref, act, dst_ref, dst_base):
        """3x3 SAME conv, banded over H.  One K=9C MXU contraction per band."""
        w = w_ref[...]                                   # (C, 9C) bf16, hoisted
        b = b_ref[...]                                   # (C, 1)  f32
        for i in range(n_bands):                         # static unroll (n_bands small)
            taps = []
            for dy in (-1, 0, 1):
                s = (i * BH + dy + 1) * W                # static lane offset
                for cs_ref in (padm_ref, cs0_ref, padp_ref):   # dx = -1, 0, +1
                    taps.append(cs_ref[:, s:s + BL])
            patches = jnp.concatenate(taps, axis=0)      # (9C, BL) bf16
            band = jnp.dot(w, patches, preferred_element_type=f32) + b
            band = act(band)                             # (C, BL) f32
            lo = dst_base + i * BL
            dst_ref[:, lo:lo + BL] = band.astype(dst_ref.dtype)

    # ---- process: conv3x3 -> relu -> conv3x3 --------------------------------
    x32 = x_ref[0].astype(f32)                           # (C, HW)
    fill_padded(pad0_ref, x32)
    build_colshifts(x32)

    # zero h1's halo rows once; interior is written band-by-band below
    h1p_ref[:, 0:W] = zrow
    h1p_ref[:, W + HW:] = zrow
    conv3x3_banded(w1_ref, b1_ref, pad0_ref,
                   lambda v: jnp.maximum(v, 0.0), h1p_ref, W)

    # conv2 reuses padm/padp for h1's column shifts; h1p is its dx=0 copy
    h1_32 = h1p_ref[:, W:W + HW].astype(f32)
    build_colshifts(h1_32)
    conv3x3_banded(w2_ref, b2_ref, h1p_ref, lambda v: v, res_ref, 0)

    res = res_ref[...]                                   # (C, HW) f32

    # ---- squeeze-excite: global mean -> 1x1 -> relu -> 1x1 -> sigmoid -------
    y = jnp.sum(res, axis=1, keepdims=True) * (1.0 / HW)                    # (C, 1)
    h = jnp.maximum(
        jnp.sum(wd1_ref[...] * y, axis=0, keepdims=True) + bd1_ref[...], 0.0)  # (1, Cr)
    z = jax.nn.sigmoid(
        jnp.sum(wd2t_ref[...] * h, axis=1, keepdims=True) + bd2_ref[...])      # (C, 1)

    # ---- z * res + x ---------------------------------------------------------
    out_ref[0] = (z * res + x_ref[0]).astype(out_ref.dtype)


def _pick_band_rows(H, W, max_band_lanes):
    """Largest row-band BH | H with (BH*W) % 128 == 0 and BH*W <= max_band_lanes."""
    cands = [b for b in range(1, H + 1) if H % b == 0 and (b * W) % 128 == 0]
    if not cands:
        return H
    fitting = [b for b in cands if b * W <= max_band_lanes]
    return max(fitting) if fitting else min(cands)


def channel_attention_nchw(x_nchw, params, band_lanes=4096):
    """PyTorch-facing wrapper: NCHW in, NCHW out (no HBM transposes)."""
    N, C, H, W = x_nchw.shape
    HW = H * W
    Cr = params["wd1"].shape[1]
    BH = _pick_band_rows(H, W, band_lanes)

    # Host-side repack into kernel-consumed, lane-dense layouts.
    # params["w*"] are HWIO (kh, kw, Cin, Cout) -> (Cout, kh*kw*Cin), bf16 for the MXU.
    w1 = jnp.transpose(params["w1"], (3, 0, 1, 2)).reshape(C, 9 * C).astype(jnp.bfloat16)
    w2 = jnp.transpose(params["w2"], (3, 0, 1, 2)).reshape(C, 9 * C).astype(jnp.bfloat16)
    b1 = params["b1"].reshape(C, 1).astype(jnp.float32)
    b2 = params["b2"].reshape(C, 1).astype(jnp.float32)
    wd1 = params["wd1"].astype(jnp.float32)              # (C, Cr)
    bd1 = params["bd1"].reshape(1, Cr).astype(jnp.float32)
    wd2t = params["wd2"].T.astype(jnp.float32)            # (C, Cr)
    bd2 = params["bd2"].reshape(C, 1).astype(jnp.float32)

    x2 = x_nchw.reshape(N, C, HW)                          # contiguous, free in XLA

    # VMEM budget: 4 padded bf16 buffers + res + double-buffered in/out blocks
    # + per-band slab.  Cap at 48 MiB (v7x physical VMEM is 64 MiB).
    itemsize = jnp.dtype(x_nchw.dtype).itemsize
    est = (4 * C * (H + 2) * W * 2                 # padded bf16 scratch
           + C * HW * 4                            # res f32
           + 2 * 2 * C * HW * itemsize             # in + out blocks, double buffered
           + 9 * C * BH * W * 2 + C * BH * W * 4   # band slab + band output
           + 2 * C * 9 * C * 2 + 8 * C * 4)        # weights + biases
    vmem_limit = int(min(max(est * 3 // 2, 32 << 20), 48 << 20))

    full = lambda shape: pl.BlockSpec(shape, lambda n: (0,) * len(shape))

    out = pl.pallas_call(
        functools.partial(_channel_attention_kernel, H=H, W=W, BH=BH),
        out_shape=jax.ShapeDtypeStruct((N, C, HW), x_nchw.dtype),
        grid_spec=pltpu.PrefetchScalarGridSpec(
            num_scalar_prefetch=0,
            grid=(N,),
            in_specs=[
                pl.BlockSpec((1, C, HW), lambda n: (n, 0, 0)),
                full((C, 9 * C)),
                full((C, 1)),
                full((C, 9 * C)),
                full((C, 1)),
                full((C, Cr)),
                full((1, Cr)),
                full((C, Cr)),
                full((C, 1)),
            ],
            out_specs=pl.BlockSpec((1, C, HW), lambda n: (n, 0, 0)),
            scratch_shapes=[
                pltpu.VMEM((C, (H + 2) * W), jnp.bfloat16),   # pad0 (x)
                pltpu.VMEM((C, (H + 2) * W), jnp.bfloat16),   # padm (dx=-1)
                pltpu.VMEM((C, (H + 2) * W), jnp.bfloat16),   # padp (dx=+1)
                pltpu.VMEM((C, (H + 2) * W), jnp.bfloat16),   # h1 (padded)
                pltpu.VMEM((C, HW), jnp.float32),             # res
            ]),
        compiler_params=pltpu.CompilerParams(
            dimension_semantics=("parallel",),
            vmem_limit_bytes=vmem_limit),
    )(x2, w1, b1, w2, b2, wd1, bd1, wd2t, bd2)

    return out.reshape(N, C, H, W)


# ----------------------------- reference ------------------------------------
def _ref_forward_nhwc(x, p):
    conv = functools.partial(
        jax.lax.conv_general_dilated,
        window_strides=(1, 1), padding="SAME",
        dimension_numbers=("NHWC", "HWIO", "NHWC"))
    h1 = jax.nn.relu(conv(x, p["w1"]) + p["b1"])
    res = conv(h1, p["w2"]) + p["b2"]
    y = jnp.mean(res, axis=(1, 2), keepdims=True)                 # (N,1,1,C)
    h = jax.nn.relu(jnp.einsum("nijc,cd->nijd", y, p["wd1"]) + p["bd1"])
    z = jax.nn.sigmoid(jnp.einsum("nijd,dc->nijc", h, p["wd2"]) + p["bd2"])
    return z * res + x


def _make_params(key, channel, reduction):
    cr = channel // reduction
    keys = jax.random.split(key, 8)
    scale3 = 1.0 / (3 * 3 * channel) ** 0.5
    scale1a = 1.0 / channel ** 0.5
    scale1b = 1.0 / max(cr, 1) ** 0.5
    u = lambda k, s, sc: jax.random.uniform(k, s, jnp.float32, -sc, sc)
    return {
        "w1":  u(keys[0], (3, 3, channel, channel), scale3),
        "b1":  u(keys[1], (1, channel), scale3),
        "w2":  u(keys[2], (3, 3, channel, channel), scale3),
        "b2":  u(keys[3], (1, channel), scale3),
        "wd1": u(keys[4], (channel, cr), scale1a),
        "bd1": u(keys[5], (1, cr), scale1a),
        "wd2": u(keys[6], (cr, channel), scale1b),
        "bd2": u(keys[7], (1, channel), scale1b),
    }


if __name__ == "__main__":
    N, C, H, W = 2, 8, 16, 16
    reduction = 4

    key = jax.random.PRNGKey(0)
    kx, kp = jax.random.split(key)
    x_nchw = jax.random.normal(kx, (N, C, H, W), jnp.float32)
    params = _make_params(kp, C, reduction)

    # Plain-JAX f32 reference of the same math.
    x_nhwc = jnp.transpose(x_nchw, (0, 2, 3, 1))
    ref = jnp.transpose(_ref_forward_nhwc(x_nhwc, params), (0, 3, 1, 2))

    # Exercise both the banded (2 bands) and single-band paths.
    # bf16 conv operands (f32 accumulation) -> loosened tolerance vs f32 ref.
    for band_lanes in (128, 4096):
        out = channel_attention_nchw(x_nchw, params, band_lanes=band_lanes)
        out = jax.block_until_ready(out)
        assert out.shape == (N, C, H, W)
        err = float(jnp.max(jnp.abs(out - ref)))
        assert err < 5e-2, f"mismatch vs reference (band_lanes={band_lanes}): {err}"

    print("KERNEL_OK")
</pallas_src>

<mosaic_0001>
module attributes {stable_mosaic.version = 11 : i64} {
  func.func @_channel_attention_kernel(%arg0: i32, %arg1: memref<1x8x256xf32, #tpu.memory_space<vmem>>, %arg2: memref<8x72xbf16, #tpu.memory_space<vmem>>, %arg3: memref<8x1xf32, #tpu.memory_space<vmem>>, %arg4: memref<8x72xbf16, #tpu.memory_space<vmem>>, %arg5: memref<8x1xf32, #tpu.memory_space<vmem>>, %arg6: memref<8x2xf32, #tpu.memory_space<vmem>>, %arg7: memref<1x2xf32, #tpu.memory_space<vmem>>, %arg8: memref<8x2xf32, #tpu.memory_space<vmem>>, %arg9: memref<8x1xf32, #tpu.memory_space<vmem>>, %arg10: memref<1x8x256xf32, #tpu.memory_space<vmem>>, %arg11: memref<8x288xbf16, #tpu.memory_space<vmem>>, %arg12: memref<8x288xbf16, #tpu.memory_space<vmem>>, %arg13: memref<8x288xbf16, #tpu.memory_space<vmem>>, %arg14: memref<8x288xbf16, #tpu.memory_space<vmem>>, %arg15: memref<8x256xf32, #tpu.memory_space<vmem>>) attributes {dimension_semantics = [#tpu.dimension_semantics<parallel>], iteration_bounds = array<i64: 2>, scalar_prefetch = 0 : i64, scratch_operands = 5 : i64, tpu.core_type = #tpu.core_type<tc>, window_params = [{transform_indices = @transform_0, window_bounds = array<i64: 1, 8, 256>}, {pipeline_mode = #tpu.pipeline_mode<synchronous>, transform_indices = @transform_1, window_bounds = array<i64: 8, 72>}, {pipeline_mode = #tpu.pipeline_mode<synchronous>, transform_indices = @transform_2, window_bounds = array<i64: 8, 1>}, {pipeline_mode = #tpu.pipeline_mode<synchronous>, transform_indices = @transform_3, window_bounds = array<i64: 8, 72>}, {pipeline_mode = #tpu.pipeline_mode<synchronous>, transform_indices = @transform_4, window_bounds = array<i64: 8, 1>}, {pipeline_mode = #tpu.pipeline_mode<synchronous>, transform_indices = @transform_5, window_bounds = array<i64: 8, 2>}, {pipeline_mode = #tpu.pipeline_mode<synchronous>, transform_indices = @transform_6, window_bounds = array<i64: 1, 2>}, {pipeline_mode = #tpu.pipeline_mode<synchronous>, transform_indices = @transform_7, window_bounds = array<i64: 8, 2>}, {pipeline_mode = #tpu.pipeline_mode<synchronous>, transform_indices = @transform_8, window_bounds = array<i64: 8, 1>}, {transform_indices = @transform_9, window_bounds = array<i64: 1, 8, 256>}]} {
    %0 = tpu.iota {dimensions = array<i32: 1>} : vector<1x256xi32>
    %c16_i32 = arith.constant 16 : i32
    %c0_i32 = arith.constant 0 : i32
    %1 = arith.cmpi eq, %c16_i32, %c0_i32 : i32
    %c1_i32 = arith.constant 1 : i32
    %2 = arith.select %1, %c1_i32, %c16_i32 : i32
    %3 = vector.broadcast %2 : i32 to vector<1x256xi32>
    %4 = arith.remsi %0, %3 : vector<1x256xi32>
    %c0_i32_0 = arith.constant 0 : i32
    %5 = vector.broadcast %c0_i32_0 : i32 to vector<1x256xi32>
    %6 = arith.cmpi ne, %4, %5 : vector<1x256xi32>
    %c0_i32_1 = arith.constant 0 : i32
    %7 = vector.broadcast %c0_i32_1 : i32 to vector<1x256xi32>
    %8 = arith.cmpi slt, %4, %7 : vector<1x256xi32>
    %c0_i32_2 = arith.constant 0 : i32
    %9 = arith.cmpi slt, %2, %c0_i32_2 : i32
    %10 = vector.broadcast %9 : i1 to vector<1x256xi1>
    %11 = vector.broadcast %10 : vector<1x256xi1> to vector<1x256xi1>
    %12 = arith.xori %8, %11 : vector<1x256xi1>
    %13 = arith.andi %12, %6 : vector<1x256xi1>
    %14 = vector.broadcast %2 : i32 to vector<1x256xi32>
    %15 = arith.addi %4, %14 : vector<1x256xi32>
    %16 = arith.select %13, %15, %4 : vector<1x256xi1>, vector<1x256xi32>
    %c1_i32_3 = arith.constant 1 : i32
    %17 = vector.broadcast %c1_i32_3 : i32 to vector<1x256xi32>
    %18 = arith.cmpi sge, %16, %17 : vector<1x256xi32>
    %c14_i32 = arith.constant 14 : i32
    %19 = vector.broadcast %c14_i32 : i32 to vector<1x256xi32>
    %20 = arith.cmpi sle, %16, %19 : vector<1x256xi32>
    %cst = arith.constant 0.000000e+00 : bf16
    %21 = vector.broadcast %cst : bf16 to vector<8x16xbf16>
    %c0 = arith.constant 0 : index
    %c0_4 = arith.constant 0 : index
    %c0_5 = arith.constant 0 : index
    %22 = vector.load %arg1[%c0, %c0_4, %c0_5] : memref<1x8x256xf32, #tpu.memory_space<vmem>>, vector<1x8x256xf32>
    %23 = vector.shape_cast %22 : vector<1x8x256xf32> to vector<8x256xf32>
    %c0_6 = arith.constant 0 : index
    %c0_7 = arith.constant 0 : index
    %24 = vector.load %arg11[%c0_6, %c0_7] : memref<8x288xbf16, #tpu.memory_space<vmem>>, vector<8x16xbf16>
    tpu.vector_store %arg11[%c0_6, %c0_7], %21 {strides = array<i32>} : memref<8x288xbf16, #tpu.memory_space<vmem>>, vector<8x16xbf16>,
    %25 = arith.truncf %23 : vector<8x256xf32> to vector<8x256xbf16>
    %c0_8 = arith.constant 0 : index
    %c16 = arith.constant 16 : index
    %26 = vector.load %arg11[%c0_8, %c16] : memref<8x288xbf16, #tpu.memory_space<vmem>>, vector<8x256xbf16>
    tpu.vector_store %arg11[%c0_8, %c16], %25 {strides = array<i32>} : memref<8x288xbf16, #tpu.memory_space<vmem>>, vector<8x256xbf16>,
    %c0_9 = arith.constant 0 : index
    %c272 = arith.constant 272 : index
    %27 = vector.load %arg11[%c0_9, %c272] : memref<8x288xbf16, #tpu.memory_space<vmem>>, vector<8x16xbf16>
    tpu.vector_store %arg11[%c0_9, %c272], %21 {strides = array<i32>} : memref<8x288xbf16, #tpu.memory_space<vmem>>, vector<8x16xbf16>,
    %c1_i32_10 = arith.constant 1 : i32
    %28 = tpu.dynamic_rotate %23 by %c1_i32_10 dim 1 : vector<8x256xf32>, i32 -> vector<8x256xf32>
    %cst_11 = arith.constant 0.000000e+00 : f32
    %29 = vector.shape_cast %18 : vector<1x256xi1> to vector<1x256xi1>
    %30 = vector.broadcast %29 : vector<1x256xi1> to vector<8x256xi1>
    %31 = vector.broadcast %cst_11 : f32 to vector<8x256xf32>
    %32 = arith.select %30, %28, %31 : vector<8x256xi1>, vector<8x256xf32>
    %c0_12 = arith.constant 0 : index
    %c0_13 = arith.constant 0 : index
    %33 = vector.load %arg12[%c0_12, %c0_13] : memref<8x288xbf16, #tpu.memory_space<vmem>>, vector<8x16xbf16>
    tpu.vector_store %arg12[%c0_12, %c0_13], %21 {strides = array<i32>} : memref<8x288xbf16, #tpu.memory_space<vmem>>, vector<8x16xbf16>,
    %34 = arith.truncf %32 : vector<8x256xf32> to vector<8x256xbf16>
    %c0_14 = arith.constant 0 : index
    %c16_15 = arith.constant 16 : index
    %35 = vector.load %arg12[%c0_14, %c16_15] : memref<8x288xbf16, #tpu.memory_space<vmem>>, vector<8x256xbf16>
    tpu.vector_store %arg12[%c0_14, %c16_15], %34 {strides = array<i32>} : memref<8x288xbf16, #tpu.memory_space<vmem>>, vector<8x256xbf16>,
    %c0_16 = arith.constant 0 : index
    %c272_17 = arith.constant 272 : index
    %36 = vector.load %arg12[%c0_16, %c272_17] : memref<8x288xbf16, #tpu.memory_space<vmem>>, vector<8x16xbf16>
    tpu.vector_store %arg12[%c0_16, %c272_17], %21 {strides = array<i32>} : memref<8x288xbf16, #tpu.memory_space<vmem>>, vector<8x16xbf16>,
    %c255_i32 = arith.constant 255 : i32
    %37 = tpu.dynamic_rotate %23 by %c255_i32 dim 1 : vector<8x256xf32>, i32 -> vector<8x256xf32>
    %cst_18 = arith.constant 0.000000e+00 : f32
    %38 = vector.shape_cast %20 : vector<1x256xi1> to vector<1x256xi1>
    %39 = vector.broadcast %38 : vector<1x256xi1> to vector<8x256xi1>
    %40 = vector.broadcast %cst_18 : f32 to vector<8x256xf32>
    %41 = arith.select %39, %37, %40 : vector<8x256xi1>, vector<8x256xf32>
    %c0_19 = arith.constant 0 : index
    %c0_20 = arith.constant 0 : index
    %42 = vector.load %arg13[%c0_19, %c0_20] : memref<8x288xbf16, #tpu.memory_space<vmem>>, vector<8x16xbf16>
    tpu.vector_store %arg13[%c0_19, %c0_20], %21 {strides = array<i32>} : memref<8x288xbf16, #tpu.memory_space<vmem>>, vector<8x16xbf16>,
    %43 = arith.truncf %41 : vector<8x256xf32> to vector<8x256xbf16>
    %c0_21 = arith.constant 0 : index
    %c16_22 = arith.constant 16 : index
    %44 = vector.load %arg13[%c0_21, %c16_22] : memref<8x288xbf16, #tpu.memory_space<vmem>>, vector<8x256xbf16>
    tpu.vector_store %arg13[%c0_21, %c16_22], %43 {strides = array<i32>} : memref<8x288xbf16, #tpu.memory_space<vmem>>, vector<8x256xbf16>,
    %c0_23 = arith.constant 0 : index
    %c272_24 = arith.constant 272 : index
    %45 = vector.load %arg13[%c0_23, %c272_24] : memref<8x288xbf16, #tpu.memory_space<vmem>>, vector<8x16xbf16>
    tpu.vector_store %arg13[%c0_23, %c272_24], %21 {strides = array<i32>} : memref<8x288xbf16, #tpu.memory_space<vmem>>, vector<8x16xbf16>,
    %c0_25 = arith.constant 0 : index
    %c0_26 = arith.constant 0 : index
    %46 = vector.load %arg14[%c0_25, %c0_26] : memref<8x288xbf16, #tpu.memory_space<vmem>>, vector<8x16xbf16>
    tpu.vector_store %arg14[%c0_25, %c0_26], %21 {strides = array<i32>} : memref<8x288xbf16, #tpu.memory_space<vmem>>, vector<8x16xbf16>,
    %c0_27 = arith.constant 0 : index
    %c272_28 = arith.constant 272 : index
    %47 = vector.load %arg14[%c0_27, %c272_28] : memref<8x288xbf16, #tpu.memory_space<vmem>>, vector<8x16xbf16>
    tpu.vector_store %arg14[%c0_27, %c272_28], %21 {strides = array<i32>} : memref<8x288xbf16, #tpu.memory_space<vmem>>, vector<8x16xbf16>,
    %c0_29 = arith.constant 0 : index
    %c0_30 = arith.constant 0 : index
    %48 = vector.load %arg2[%c0_29, %c0_30] : memref<8x72xbf16, #tpu.memory_space<vmem>>, vector<8x72xbf16>
    %c0_31 = arith.constant 0 : index
    %c0_32 = arith.constant 0 : index
    %49 = vector.load %arg3[%c0_31, %c0_32] : memref<8x1xf32, #tpu.memory_space<vmem>>, vector<8x1xf32>
    %c0_33 = arith.constant 0 : index
    %c0_34 = arith.constant 0 : index
    %50 = vector.load %arg12[%c0_33, %c0_34] : memref<8x288xbf16, #tpu.memory_space<vmem>>, vector<8x128xbf16>
    %c0_35 = arith.constant 0 : index
    %c0_36 = arith.constant 0 : index
    %51 = vector.load %arg11[%c0_35, %c0_36] : memref<8x288xbf16, #tpu.memory_space<vmem>>, vector<8x128xbf16>
    %c0_37 = arith.constant 0 : index
    %c0_38 = arith.constant 0 : index
    %52 = vector.load %arg13[%c0_37, %c0_38] : memref<8x288xbf16, #tpu.memory_space<vmem>>, vector<8x128xbf16>
    %c0_39 = arith.constant 0 : index
    %c16_40 = arith.constant 16 : index
    %53 = vector.load %arg12[%c0_39, %c16_40] : memref<8x288xbf16, #tpu.memory_space<vmem>>, vector<8x128xbf16>
    %c0_41 = arith.constant 0 : index
    %c16_42 = arith.constant 16 : index
    %54 = vector.load %arg11[%c0_41, %c16_42] : memref<8x288xbf16, #tpu.memory_space<vmem>>, vector<8x128xbf16>
    %c0_43 = arith.constant 0 : index
    %c16_44 = arith.constant 16 : index
    %55 = vector.load %arg13[%c0_43, %c16_44] : memref<8x288xbf16, #tpu.memory_space<vmem>>, vector<8x128xbf16>
    %c0_45 = arith.constant 0 : index
    %c32 = arith.constant 32 : index
    %56 = vector.load %arg12[%c0_45, %c32] : memref<8x288xbf16, #tpu.memory_space<vmem>>, vector<8x128xbf16>
    %c0_46 = arith.constant 0 : index
    %c32_47 = arith.constant 32 : index
    %57 = vector.load %arg11[%c0_46, %c32_47] : memref<8x288xbf16, #tpu.memory_space<vmem>>, vector<8x128xbf16>
    %c0_48 = arith.constant 0 : index
    %c32_49 = arith.constant 32 : index
    %58 = vector.load %arg13[%c0_48, %c32_49] : memref<8x288xbf16, #tpu.memory_space<vmem>>, vector<8x128xbf16>
    %59 = tpu.concatenate %50, %51, %52, %53, %54, %55, %56, %57, %58 in 0 : vector<8x128xbf16>, vector<8x128xbf16>, vector<8x128xbf16>, vector<8x128xbf16>, vector<8x128xbf16>, vector<8x128xbf16>, vector<8x128xbf16>, vector<8x128xbf16>, vector<8x128xbf16> -> vector<72x128xbf16>
    %cst_50 = arith.constant dense<0.000000e+00> : vector<8x128xf32>
    %60 = tpu.matmul %48, %59, %cst_50 {dimension_numbers = #tpu.dot_dimension_numbers<[1], [0], [0], [1], [0, 0, 1, 1], [], []>} : vector<8x72xbf16>, vector<72x128xbf16>, vector<8x128xf32> -> vector<8x128xf32>
    %61 = vector.broadcast %49 : vector<8x1xf32> to vector<8x128xf32>
    %62 = arith.addf %60, %61 : vector<8x128xf32>
    %cst_51 = arith.constant 0.000000e+00 : f32
    %63 = vector.broadcast %cst_51 : f32 to vector<8x128xf32>
    %64 = arith.maximumf %62, %63 : vector<8x128xf32>
    %65 = arith.truncf %64 : vector<8x128xf32> to vector<8x128xbf16>
    %c0_52 = arith.constant 0 : index
    %c16_53 = arith.constant 16 : index
    %66 = vector.load %arg14[%c0_52, %c16_53] : memref<8x288xbf16, #tpu.memory_space<vmem>>, vector<8x128xbf16>
    tpu.vector_store %arg14[%c0_52, %c16_53], %65 {strides = array<i32>} : memref<8x288xbf16, #tpu.memory_space<vmem>>, vector<8x128xbf16>,
    %c0_54 = arith.constant 0 : index
    %c128 = arith.constant 128 : index
    %67 = vector.load %arg12[%c0_54, %c128] : memref<8x288xbf16, #tpu.memory_space<vmem>>, vector<8x128xbf16>
    %c0_55 = arith.constant 0 : index
    %c128_56 = arith.constant 128 : index
    %68 = vector.load %arg11[%c0_55, %c128_56] : memref<8x288xbf16, #tpu.memory_space<vmem>>, vector<8x128xbf16>
    %c0_57 = arith.constant 0 : index
    %c128_58 = arith.constant 128 : index
    %69 = vector.load %arg13[%c0_57, %c128_58] : memref<8x288xbf16, #tpu.memory_space<vmem>>, vector<8x128xbf16>
    %c0_59 = arith.constant 0 : index
    %c144 = arith.constant 144 : index
    %70 = vector.load %arg12[%c0_59, %c144] : memref<8x288xbf16, #tpu.memory_space<vmem>>, vector<8x128xbf16>
    %c0_60 = arith.constant 0 : index
    %c144_61 = arith.constant 144 : index
    %71 = vector.load %arg11[%c0_60, %c144_61] : memref<8x288xbf16, #tpu.memory_space<vmem>>, vector<8x128xbf16>
    %c0_62 = arith.constant 0 : index
    %c144_63 = arith.constant 144 : index
    %72 = vector.load %arg13[%c0_62, %c144_63] : memref<8x288xbf16, #tpu.memory_space<vmem>>, vector<8x128xbf16>
    %c0_64 = arith.constant 0 : index
    %c160 = arith.constant 160 : index
    %73 = vector.load %arg12[%c0_64, %c160] : memref<8x288xbf16, #tpu.memory_space<vmem>>, vector<8x128xbf16>
    %c0_65 = arith.constant 0 : index
    %c160_66 = arith.constant 160 : index
    %74 = vector.load %arg11[%c0_65, %c160_66] : memref<8x288xbf16, #tpu.memory_space<vmem>>, vector<8x128xbf16>
    %c0_67 = arith.constant 0 : index
    %c160_68 = arith.constant 160 : index
    %75 = vector.load %arg13[%c0_67, %c160_68] : memref<8x288xbf16, #tpu.memory_space<vmem>>, vector<8x128xbf16>
    %76 = tpu.concatenate %67, %68, %69, %70, %71, %72, %73, %74, %75 in 0 : vector<8x128xbf16>, vector<8x128xbf16>, vector<8x128xbf16>, vector<8x128xbf16>, vector<8x128xbf16>, vector<8x128xbf16>, vector<8x128xbf16>, vector<8x128xbf16>, vector<8x128xbf16> -> vector<72x128xbf16>
    %cst_69 = arith.constant dense<0.000000e+00> : vector<8x128xf32>
    %77 = tpu.matmul %48, %76, %cst_69 {dimension_numbers = #tpu.dot_dimension_numbers<[1], [0], [0], [1], [0, 0, 1, 1], [], []>} : vector<8x72xbf16>, vector<72x128xbf16>, vector<8x128xf32> -> vector<8x128xf32>
    %78 = vector.broadcast %49 : vector<8x1xf32> to vector<8x128xf32>
    %79 = arith.addf %77, %78 : vector<8x128xf32>
    %cst_70 = arith.constant 0.000000e+00 : f32
    %80 = vector.broadcast %cst_70 : f32 to vector<8x128xf32>
    %81 = arith.maximumf %79, %80 : vector<8x128xf32>
    %82 = arith.truncf %81 : vector<8x128xf32> to vector<8x128xbf16>
    %c0_71 = arith.constant 0 : index
    %c144_72 = arith.constant 144 : index
    %83 = vector.load %arg14[%c0_71, %c144_72] : memref<8x288xbf16, #tpu.memory_space<vmem>>, vector<8x128xbf16>
    tpu.vector_store %arg14[%c0_71, %c144_72], %82 {strides = array<i32>} : memref<8x288xbf16, #tpu.memory_space<vmem>>, vector<8x128xbf16>,
    %c0_73 = arith.constant 0 : index
    %c16_74 = arith.constant 16 : index
    %84 = vector.load %arg14[%c0_73, %c16_74] : memref<8x288xbf16, #tpu.memory_space<vmem>>, vector<8x256xbf16>
    %85 = arith.extf %84 : vector<8x256xbf16> to vector<8x256xf32>
    %c1_i32_75 = arith.constant 1 : i32
    %86 = tpu.dynamic_rotate %85 by %c1_i32_75 dim 1 : vector<8x256xf32>, i32 -> vector<8x256xf32>
    %cst_76 = arith.constant 0.000000e+00 : f32
    %87 = vector.shape_cast %18 : vector<1x256xi1> to vector<1x256xi1>
    %88 = vector.broadcast %87 : vector<1x256xi1> to vector<8x256xi1>
    %89 = vector.broadcast %cst_76 : f32 to vector<8x256xf32>
    %90 = arith.select %88, %86, %89 : vector<8x256xi1>, vector<8x256xf32>
    %c0_77 = arith.constant 0 : index
    %c0_78 = arith.constant 0 : index
    %91 = vector.load %arg12[%c0_77, %c0_78] : memref<8x288xbf16, #tpu.memory_space<vmem>>, vector<8x16xbf16>
    tpu.vector_store %arg12[%c0_77, %c0_78], %21 {strides = array<i32>} : memref<8x288xbf16, #tpu.memory_space<vmem>>, vector<8x16xbf16>,
    %92 = arith.truncf %90 : vector<8x256xf32> to vector<8x256xbf16>
    %c0_79 = arith.constant 0 : index
    %c16_80 = arith.constant 16 : index
    %93 = vector.load %arg12[%c0_79, %c16_80] : memref<8x288xbf16, #tpu.memory_space<vmem>>, vector<8x256xbf16>
    tpu.vector_store %arg12[%c0_79, %c16_80], %92 {strides = array<i32>} : memref<8x288xbf16, #tpu.memory_space<vmem>>, vector<8x256xbf16>,
    %c0_81 = arith.constant 0 : index
    %c272_82 = arith.constant 272 : index
    %94 = vector.load %arg12[%c0_81, %c272_82] : memref<8x288xbf16, #tpu.memory_space<vmem>>, vector<8x16xbf16>
    tpu.vector_store %arg12[%c0_81, %c272_82], %21 {strides = array<i32>} : memref<8x288xbf16, #tpu.memory_space<vmem>>, vector<8x16xbf16>,
    %c255_i32_83 = arith.constant 255 : i32
    %95 = tpu.dynamic_rotate %85 by %c255_i32_83 dim 1 : vector<8x256xf32>, i32 -> vector<8x256xf32>
    %cst_84 = arith.constant 0.000000e+00 : f32
    %96 = vector.shape_cast %20 : vector<1x256xi1> to vector<1x256xi1>
    %97 = vector.broadcast %96 : vector<1x256xi1> to vector<8x256xi1>
    %98 = vector.broadcast %cst_84 : f32 to vector<8x256xf32>
    %99 = arith.select %97, %95, %98 : vector<8x256xi1>, vector<8x256xf32>
    %c0_85 = arith.constant 0 : index
    %c0_86 = arith.constant 0 : index
    %100 = vector.load %arg13[%c0_85, %c0_86] : memref<8x288xbf16, #tpu.memory_space<vmem>>, vector<8x16xbf16>
    tpu.vector_store %arg13[%c0_85, %c0_86], %21 {strides = array<i32>} : memref<8x288xbf16, #tpu.memory_space<vmem>>, vector<8x16xbf16>,
    %101 = arith.truncf %99 : vector<8x256xf32> to vector<8x256xbf16>
    %c0_87 = arith.constant 0 : index
    %c16_88 = arith.constant 16 : index
    %102 = vector.load %arg13[%c0_87, %c16_88] : memref<8x288xbf16, #tpu.memory_space<vmem>>, vector<8x256xbf16>
    tpu.vector_store %arg13[%c0_87, %c16_88], %101 {strides = array<i32>} : memref<8x288xbf16, #tpu.memory_space<vmem>>, vector<8x256xbf16>,
    %c0_89 = arith.constant 0 : index
    %c272_90 = arith.constant 272 : index
    %103 = vector.load %arg13[%c0_89, %c272_90] : memref<8x288xbf16, #tpu.memory_space<vmem>>, vector<8x16xbf16>
    tpu.vector_store %arg13[%c0_89, %c272_90], %21 {strides = array<i32>} : memref<8x288xbf16, #tpu.memory_space<vmem>>, vector<8x16xbf16>,
    %c0_91 = arith.constant 0 : index
    %c0_92 = arith.constant 0 : index
    %104 = vector.load %arg4[%c0_91, %c0_92] : memref<8x72xbf16, #tpu.memory_space<vmem>>, vector<8x72xbf16>
    %c0_93 = arith.constant 0 : index
    %c0_94 = arith.constant 0 : index
    %105 = vector.load %arg5[%c0_93, %c0_94] : memref<8x1xf32, #tpu.memory_space<vmem>>, vector<8x1xf32>
    %c0_95 = arith.constant 0 : index
    %c0_96 = arith.constant 0 : index
    %106 = vector.load %arg12[%c0_95, %c0_96] : memref<8x288xbf16, #tpu.memory_space<vmem>>, vector<8x128xbf16>
    %c0_97 = arith.constant 0 : index
    %c0_98 = arith.constant 0 : index
    %107 = vector.load %arg14[%c0_97, %c0_98] : memref<8x288xbf16, #tpu.memory_space<vmem>>, vector<8x128xbf16>
    %c0_99 = arith.constant 0 : index
    %c0_100 = arith.constant 0 : index
    %108 = vector.load %arg13[%c0_99, %c0_100] : memref<8x288xbf16, #tpu.memory_space<vmem>>, vector<8x128xbf16>
    %c0_101 = arith.constant 0 : index
    %c16_102 = arith.constant 16 : index
    %109 = vector.load %arg12[%c0_101, %c16_102] : memref<8x288xbf16, #tpu.memory_space<vmem>>, vector<8x128xbf16>
    %c0_103 = arith.constant 0 : index
    %c16_104 = arith.constant 16 : index
    %110 = vector.load %arg14[%c0_103, %c16_104] : memref<8x288xbf16, #tpu.memory_space<vmem>>, vector<8x128xbf16>
    %c0_105 = arith.constant 0 : index
    %c16_106 = arith.constant 16 : index
    %111 = vector.load %arg13[%c0_105, %c16_106] : memref<8x288xbf16, #tpu.memory_space<vmem>>, vector<8x128xbf16>
    %c0_107 = arith.constant 0 : index
    %c32_108 = arith.constant 32 : index
    %112 = vector.load %arg12[%c0_107, %c32_108] : memref<8x288xbf16, #tpu.memory_space<vmem>>, vector<8x128xbf16>
    %c0_109 = arith.constant 0 : index
    %c32_110 = arith.constant 32 : index
    %113 = vector.load %arg14[%c0_109, %c32_110] : memref<8x288xbf16, #tpu.memory_space<vmem>>, vector<8x128xbf16>
    %c0_111 = arith.constant 0 : index
    %c32_112 = arith.constant 32 : index
    %114 = vector.load %arg13[%c0_111, %c32_112] : memref<8x288xbf16, #tpu.memory_space<vmem>>, vector<8x128xbf16>
    %115 = tpu.concatenate %106, %107, %108, %109, %110, %111, %112, %113, %114 in 0 : vector<8x128xbf16>, vector<8x128xbf16>, vector<8x128xbf16>, vector<8x128xbf16>, vector<8x128xbf16>, vector<8x128xbf16>, vector<8x128xbf16>, vector<8x128xbf16>, vector<8x128xbf16> -> vector<72x128xbf16>
    %cst_113 = arith.constant dense<0.000000e+00> : vector<8x128xf32>
    %116 = tpu.matmul %104, %115, %cst_113 {dimension_numbers = #tpu.dot_dimension_numbers<[1], [0], [0], [1], [0, 0, 1, 1], [], []>} : vector<8x72xbf16>, vector<72x128xbf16>, vector<8x128xf32> -> vector<8x128xf32>
    %117 = vector.broadcast %105 : vector<8x1xf32> to vector<8x128xf32>
    %118 = arith.addf %116, %117 : vector<8x128xf32>
    %c0_114 = arith.constant 0 : index
    %c0_115 = arith.constant 0 : index
    %119 = vector.load %arg15[%c0_114, %c0_115] : memref<8x256xf32, #tpu.memory_space<vmem>>, vector<8x128xf32>
    tpu.vector_store %arg15[%c0_114, %c0_115], %118 {strides = array<i32>} : memref<8x256xf32, #tpu.memory_space<vmem>>, vector<8x128xf32>,
    %c0_116 = arith.constant 0 : index
    %c128_117 = arith.constant 128 : index
    %120 = vector.load %arg12[%c0_116, %c128_117] : memref<8x288xbf16, #tpu.memory_space<vmem>>, vector<8x128xbf16>
    %c0_118 = arith.constant 0 : index
    %c128_119 = arith.constant 128 : index
    %121 = vector.load %arg14[%c0_118, %c128_119] : memref<8x288xbf16, #tpu.memory_space<vmem>>, vector<8x128xbf16>
    %c0_120 = arith.constant 0 : index
    %c128_121 = arith.constant 128 : index
    %122 = vector.load %arg13[%c0_120, %c128_121] : memref<8x288xbf16, #tpu.memory_space<vmem>>, vector<8x128xbf16>
    %c0_122 = arith.constant 0 : index
    %c144_123 = arith.constant 144 : index
    %123 = vector.load %arg12[%c0_122, %c144_123] : memref<8x288xbf16, #tpu.memory_space<vmem>>, vector<8x128xbf16>
    %c0_124 = arith.constant 0 : index
    %c144_125 = arith.constant 144 : index
    %124 = vector.load %arg14[%c0_124, %c144_125] : memref<8x288xbf16, #tpu.memory_space<vmem>>, vector<8x128xbf16>
    %c0_126 = arith.constant 0 : index
    %c144_127 = arith.constant 144 : index
    %125 = vector.load %arg13[%c0_126, %c144_127] : memref<8x288xbf16, #tpu.memory_space<vmem>>, vector<8x128xbf16>
    %c0_128 = arith.constant 0 : index
    %c160_129 = arith.constant 160 : index
    %126 = vector.load %arg12[%c0_128, %c160_129] : memref<8x288xbf16, #tpu.memory_space<vmem>>, vector<8x128xbf16>
    %c0_130 = arith.constant 0 : index
    %c160_131 = arith.constant 160 : index
    %127 = vector.load %arg14[%c0_130, %c160_131] : memref<8x288xbf16, #tpu.memory_space<vmem>>, vector<8x128xbf16>
    %c0_132 = arith.constant 0 : index
    %c160_133 = arith.constant 160 : index
    %128 = vector.load %arg13[%c0_132, %c160_133] : memref<8x288xbf16, #tpu.memory_space<vmem>>, vector<8x128xbf16>
    %129 = tpu.concatenate %120, %121, %122, %123, %124, %125, %126, %127, %128 in 0 : vector<8x128xbf16>, vector<8x128xbf16>, vector<8x128xbf16>, vector<8x128xbf16>, vector<8x128xbf16>, vector<8x128xbf16>, vector<8x128xbf16>, vector<8x128xbf16>, vector<8x128xbf16> -> vector<72x128xbf16>
    %cst_134 = arith.constant dense<0.000000e+00> : vector<8x128xf32>
    %130 = tpu.matmul %104, %129, %cst_134 {dimension_numbers = #tpu.dot_dimension_numbers<[1], [0], [0], [1], [0, 0, 1, 1], [], []>} : vector<8x72xbf16>, vector<72x128xbf16>, vector<8x128xf32> -> vector<8x128xf32>
    %131 = vector.broadcast %105 : vector<8x1xf32> to vector<8x128xf32>
    %132 = arith.addf %130, %131 : vector<8x128xf32>
    %c0_135 = arith.constant 0 : index
    %c128_136 = arith.constant 128 : index
    %133 = vector.load %arg15[%c0_135, %c128_136] : memref<8x256xf32, #tpu.memory_space<vmem>>, vector<8x128xf32>
    tpu.vector_store %arg15[%c0_135, %c128_136], %132 {strides = array<i32>} : memref<8x256xf32, #tpu.memory_space<vmem>>, vector<8x128xf32>,
    %c0_137 = arith.constant 0 : index
    %c0_138 = arith.constant 0 : index
    %134 = vector.load %arg15[%c0_137, %c0_138] : memref<8x256xf32, #tpu.memory_space<vmem>>, vector<8x256xf32>
    %cst_139 = arith.constant dense<0.000000e+00> : vector<8xf32>
    %135 = vector.multi_reduction <add>, %134, %cst_139 [1] : vector<8x256xf32> to vector<8xf32>
    %136 = vector.shape_cast %135 : vector<8xf32> to vector<8x1xf32>
    %cst_140 = arith.constant 3.906250e-03 : f32
    %137 = vector.broadcast %cst_140 : f32 to vector<8x1xf32>
    %138 = arith.mulf %136, %137 : vector<8x1xf32>
    %c0_141 = arith.constant 0 : index
    %c0_142 = arith.constant 0 : index
    %139 = vector.load %arg6[%c0_141, %c0_142] : memref<8x2xf32, #tpu.memory_space<vmem>>, vector<8x2xf32>
    %140 = vector.broadcast %138 : vector<8x1xf32> to vector<8x2xf32>
    %141 = arith.mulf %139, %140 : vector<8x2xf32>
    %cst_143 = arith.constant dense<0.000000e+00> : vector<2xf32>
    %142 = vector.multi_reduction <add>, %141, %cst_143 [0] : vector<8x2xf32> to vector<2xf32>
    %143 = vector.shape_cast %142 : vector<2xf32> to vector<1x2xf32>
    %c0_144 = arith.constant 0 : index
    %c0_145 = arith.constant 0 : index
    %144 = vector.load %arg7[%c0_144, %c0_145] : memref<1x2xf32, #tpu.memory_space<vmem>>, vector<1x2xf32>
    %145 = arith.addf %143, %144 : vector<1x2xf32>
    %cst_146 = arith.constant 0.000000e+00 : f32
    %146 = vector.broadcast %cst_146 : f32 to vector<1x2xf32>
    %147 = arith.maximumf %145, %146 : vector<1x2xf32>
    %c0_147 = arith.constant 0 : index
    %c0_148 = arith.constant 0 : index
    %148 = vector.load %arg8[%c0_147, %c0_148] : memref<8x2xf32, #tpu.memory_space<vmem>>, vector<8x2xf32>
    %149 = vector.broadcast %147 : vector<1x2xf32> to vector<8x2xf32>
    %150 = arith.mulf %148, %149 : vector<8x2xf32>
    %cst_149 = arith.constant dense<0.000000e+00> : vector<8xf32>
    %151 = vector.multi_reduction <add>, %150, %cst_149 [1] : vector<8x2xf32> to vector<8xf32>
    %152 = vector.shape_cast %151 : vector<8xf32> to vector<8x1xf32>
    %c0_150 = arith.constant 0 : index
    %c0_151 = arith.constant 0 : index
    %153 = vector.load %arg9[%c0_150, %c0_151] : memref<8x1xf32, #tpu.memory_space<vmem>>, vector<8x1xf32>
    %154 = arith.addf %152, %153 : vector<8x1xf32>
    %155 = arith.negf %154 : vector<8x1xf32>
    %156 = math.exp %155 : vector<8x1xf32>
    %cst_152 = arith.constant 1.000000e+00 : f32
    %157 = vector.broadcast %cst_152 : f32 to vector<8x1xf32>
    %158 = arith.addf %157, %156 : vector<8x1xf32>
    %159 = arith.divf %157, %158 : vector<8x1xf32>
    %160 = vector.broadcast %159 : vector<8x1xf32> to vector<8x256xf32>
    %161 = arith.mulf %160, %134 : vector<8x256xf32>
    %c0_153 = arith.constant 0 : index
    %c0_154 = arith.constant 0 : index
    %c0_155 = arith.constant 0 : index
    %162 = vector.load %arg1[%c0_153, %c0_154, %c0_155] : memref<1x8x256xf32, #tpu.memory_space<vmem>>, vector<1x8x256xf32>
    %163 = vector.shape_cast %162 : vector<1x8x256xf32> to vector<8x256xf32>
    %164 = arith.addf %161, %163 : vector<8x256xf32>
    %c0_156 = arith.constant 0 : index
    %c0_157 = arith.constant 0 : index
    %c0_158 = arith.constant 0 : index
    %165 = vector.load %arg10[%c0_156, %c0_157, %c0_158] : memref<1x8x256xf32, #tpu.memory_space<vmem>>, vector<1x8x256xf32>
    %166 = vector.shape_cast %165 : vector<1x8x256xf32> to vector<8x256xf32>
    %167 = vector.shape_cast %164 : vector<8x256xf32> to vector<1x8x256xf32>
    tpu.vector_store %arg10[%c0_156, %c0_157, %c0_158], %167 {strides = array<i32>} : memref<1x8x256xf32, #tpu.memory_space<vmem>>, vector<1x8x256xf32>,
    return
  }
  func.func @transform_0(%arg0: i32) -> (i32, i32, i32) {
    %c0_i32 = arith.constant 0 : i32
    %c0_i32_0 = arith.constant 0 : i32
    %c0_i32_1 = arith.constant 0 : i32
    return %arg0, %c0_i32, %c0_i32_0 : i32, i32, i32
  }
  func.func @transform_1(%arg0: i32) -> (i32, i32) {
    %c0_i32 = arith.constant 0 : i32
    %c0_i32_0 = arith.constant 0 : i32
    %c0_i32_1 = arith.constant 0 : i32
    return %c0_i32, %c0_i32_0 : i32, i32
  }
  func.func @transform_2(%arg0: i32) -> (i32, i32) {
    %c0_i32 = arith.constant 0 : i32
    %c0_i32_0 = arith.constant 0 : i32
    %c0_i32_1 = arith.constant 0 : i32
    return %c0_i32, %c0_i32_0 : i32, i32
  }
  func.func @transform_3(%arg0: i32) -> (i32, i32) {
    %c0_i32 = arith.constant 0 : i32
    %c0_i32_0 = arith.constant 0 : i32
    %c0_i32_1 = arith.constant 0 : i32
    return %c0_i32, %c0_i32_0 : i32, i32
  }
  func.func @transform_4(%arg0: i32) -> (i32, i32) {
    %c0_i32 = arith.constant 0 : i32
    %c0_i32_0 = arith.constant 0 : i32
    %c0_i32_1 = arith.constant 0 : i32
    return %c0_i32, %c0_i32_0 : i32, i32
  }
  func.func @transform_5(%arg0: i32) -> (i32, i32) {
    %c0_i32 = arith.constant 0 : i32
    %c0_i32_0 = arith.constant 0 : i32
    %c0_i32_1 = arith.constant 0 : i32
    return %c0_i32, %c0_i32_0 : i32, i32
  }
  func.func @transform_6(%arg0: i32) -> (i32, i32) {
    %c0_i32 = arith.constant 0 : i32
    %c0_i32_0 = arith.constant 0 : i32
    %c0_i32_1 = arith.constant 0 : i32
    return %c0_i32, %c0_i32_0 : i32, i32
  }
  func.func @transform_7(%arg0: i32) -> (i32, i32) {
    %c0_i32 = arith.constant 0 : i32
    %c0_i32_0 = arith.constant 0 : i32
    %c0_i32_1 = arith.constant 0 : i32
    return %c0_i32, %c0_i32_0 : i32, i32
  }
  func.func @transform_8(%arg0: i32) -> (i32, i32) {
    %c0_i32 = arith.constant 0 : i32
    %c0_i32_0 = arith.constant 0 : i32
    %c0_i32_1 = arith.constant 0 : i32
    return %c0_i32, %c0_i32_0 : i32, i32
  }
  func.func @transform_9(%arg0: i32) -> (i32, i32, i32) {
    %c0_i32 = arith.constant 0 : i32
    %c0_i32_0 = arith.constant 0 : i32
    %c0_i32_1 = arith.constant 0 : i32
    return %arg0, %c0_i32, %c0_i32_0 : i32, i32, i32
  }
}

</mosaic_0001>

<llo_original>
// kernel: tpu_custom_call.1
$region0: #{tpu_custom_call.1}
  #allocation0 [shape = 'u32[]', space=smem, size = 0x4, offset = 0x4, fixed_abs, tag = 'smem constant byte address 0x4 - core index']
  #allocation1 [shape = 'u32[144,128]{1,0:T(1,128)}', space=vmem, size = 0x12000, scoped, tag = 'internal scratch']
  #allocation2 [shape = 'bf16[8,288]{1,0:T(8,128)(2,1)}', space=vmem, size = 0x1800, scoped, tag = 'scratch operand']
  #allocation3 [shape = 'bf16[8,288]{1,0:T(8,128)(2,1)}', space=vmem, size = 0x1800, scoped, tag = 'scratch operand']
  #allocation4 [shape = 'bf16[8,288]{1,0:T(8,128)(2,1)}', space=vmem, size = 0x1800, scoped, tag = 'scratch operand']
  #allocation5 [shape = 'bf16[8,288]{1,0:T(8,128)(2,1)}', space=vmem, size = 0x1800, scoped, tag = 'scratch operand']
  #allocation6 [shape = 'f32[8,256]{1,0:T(8,128)}', space=vmem, size = 0x2000, scoped, tag = 'scratch operand']
  %s0 = inlined_call_operand.vmem [shape: f32[2,8,256], index: 0, kind: input, shape index: {}]
  %s1 = inlined_call_operand.vmem [shape: bf16[8,72], index: 1, kind: input, shape index: {}]
  %s2 = inlined_call_operand.vmem [shape: f32[8,1], index: 2, kind: input, shape index: {}]
  %s3 = inlined_call_operand.vmem [shape: bf16[8,72], index: 3, kind: input, shape index: {}]
  %s4 = inlined_call_operand.vmem [shape: f32[8,1], index: 4, kind: input, shape index: {}]
  %s5 = inlined_call_operand.vmem [shape: f32[8,2], index: 5, kind: input, shape index: {}]
  %s6 = inlined_call_operand.vmem [shape: f32[1,2], index: 6, kind: input, shape index: {}]
  %s7 = inlined_call_operand.vmem [shape: f32[8,2], index: 7, kind: input, shape index: {}]
  %s8 = inlined_call_operand.vmem [shape: f32[8,1], index: 8, kind: input, shape index: {}]
  %s9 = inlined_call_operand.hbm [shape: f32[2,8,256], index: 9, kind: output, shape index: {}]
  %s10 = sld [smem:[#allocation0]]
  $region69: #{tpu_custom_call.1} parent=0
    _
  %s12 = ssub.s32 1, %s10
  %s13 = scalar_select 0, %s12, %s10
  $region1: #{tpu_custom_call.1} parent=0
    #allocation7 [shape = 'u8[16384]{0}', space=vmem, size = 0x4000, scoped, tag = 'output window, operand 0']
    #allocation8 [shape = 's32[2]{0}', space=sflag, size = 0x8, scoped, tag = 'scoped memory for tpu_custom_call.1']
    %14 = vsyncpa [#allocation8], 0
    %s15 = scalar_lea.sflag [#allocation8], 1
    %16 = vsyncpa %s15, 0
    loop: start=0, step=1, limit=4
    $region2: #{tpu_custom_call.1} parent=1 // loop_pre_header
      _
    $region3: #{tpu_custom_call.1} parent=1 // loop_header
      %s18 = sphi 0, %s22
      %p19 = scmp.ge.s32.totalorder %s18, 4
      %s28 = sphi 0, %s30
      %s31 = sphi 0, %s28
      %s32 = sphi 0, %s31
      %s48 = sphi 0, %s32
      %s52 = sphi 0, %s52
      %s54 = sphi 0, %s52
      %s55 = sphi 0, %s54
      %s69 = sphi 0, %s55
      %s73 = sphi 0, %s73
      %s75 = sphi 0, %s73
      %s76 = sphi 0, %s75
      %s90 = sphi 0, %s76
      %s94 = sphi 0, %s94
      %s96 = sphi 0, %s94
      %s97 = sphi 0, %s96
      %s111 = sphi 0, %s97
      %s115 = sphi 0, %s115
      %s117 = sphi 0, %s115
      %s118 = sphi 0, %s117
      %s132 = sphi 0, %s118
      %s136 = sphi 0, %s136
      %s138 = sphi 0, %s136
      %s139 = sphi 0, %s138
      %s153 = sphi 0, %s139
      %s157 = sphi 0, %s157
      %s159 = sphi 0, %s157
      %s160 = sphi 0, %s159
      %s174 = sphi 0, %s160
      %s178 = sphi 0, %s178
      %s180 = sphi 0, %s178
      %s181 = sphi 0, %s180
      %s195 = sphi 0, %s181
      %s199 = sphi 0, %s199
      %s201 = sphi 0, %s199
      %s202 = sphi 0, %s201
      %s216 = sphi 0, %s202
      %s222 = sphi 0, %s224
      %s225 = sphi 0, %s222
      %s226 = sphi 0, %s225
      %s242 = sphi 0, %s226
    $region4: #{tpu_custom_call.1} parent=1 // loop_header_branch
      %21 = sbr.rel (%p19) target = $region8
    $region5: #{tpu_custom_call.1} parent=1 // loop_body
      %s23 = ssub.s32 %s18, 1
      %s24 = ssub.s32 %s18, 2
      %s25 = sadd.s32 %s18, 1
      %s26 = ssub.s32 %s18, %s25
      %p27 = scmp.eq.s32.totalorder %s26, 0
      %s29 = sadd.s32 %s28, 1
      %s30 = scalar_select %p27, %s28, %s29
      %p33 = pneg %p27
      %p34 = scmp.eq.s32.totalorder %s18, 1
      %p35 = por %p33, %p34
      %p36 = scmp.ne.s32.totalorder %s28, %s31
      %p37 = scmp.eq.s32.totalorder %s18, 0
      %p38 = por %p36, %p37
      %p39 = scmp.ne.s32.totalorder %s28, %s31
      %p40 = scmp.eq.s32.totalorder %s23, 1
      %p41 = por %p39, %p40
      %p42 = scmp.ne.s32.totalorder %s31, %s32
      %p43 = scmp.eq.s32.totalorder %s23, 0
      %p44 = por %p42, %p43
      %p45 = scmp.ne.s32.totalorder %s31, %s32
      %p46 = scmp.eq.s32.totalorder %s24, 1
      %p47 = por %p45, %p46
      %p49 = scmp.ne.s32.totalorder %s32, %s48
      %p50 = scmp.eq.s32.totalorder %s24, 0
      %p51 = por %p49, %p50
      %s53 = sadd.s32 %s52, 1
      %p56 = scmp.eq.s32.totalorder %s18, 1
      %p57 = scmp.ne.s32.totalorder %s52, %s54
      %p58 = scmp.eq.s32.totalorder %s18, 0
      %p59 = por %p57, %p58
      %p60 = scmp.ne.s32.totalorder %s52, %s54
      %p61 = scmp.eq.s32.totalorder %s23, 1
      %p62 = por %p60, %p61
      %p63 = scmp.ne.s32.totalorder %s54, %s55
      %p64 = scmp.eq.s32.totalorder %s23, 0
      %p65 = por %p63, %p64
      %p66 = scmp.ne.s32.totalorder %s54, %s55
      %p67 = scmp.eq.s32.totalorder %s24, 1
      %p68 = por %p66, %p67
      %p70 = scmp.ne.s32.totalorder %s55, %s69
      %p71 = scmp.eq.s32.totalorder %s24, 0
      %p72 = por %p70, %p71
      %s74 = sadd.s32 %s73, 1
      %p77 = scmp.eq.s32.totalorder %s18, 1
      %p78 = scmp.ne.s32.totalorder %s73, %s75
      %p79 = scmp.eq.s32.totalorder %s18, 0
      %p80 = por %p78, %p79
      %p81 = scmp.ne.s32.totalorder %s73, %s75
      %p82 = scmp.eq.s32.totalorder %s23, 1
      %p83 = por %p81, %p82
      %p84 = scmp.ne.s32.totalorder %s75, %s76
      %p85 = scmp.eq.s32.totalorder %s23, 0
      %p86 = por %p84, %p85
      %p87 = scmp.ne.s32.totalorder %s75, %s76
      %p88 = scmp.eq.s32.totalorder %s24, 1
      %p89 = por %p87, %p88
      %p91 = scmp.ne.s32.totalorder %s76, %s90
      %p92 = scmp.eq.s32.totalorder %s24, 0
      %p93 = por %p91, %p92
      %s95 = sadd.s32 %s94, 1
      %p98 = scmp.eq.s32.totalorder %s18, 1
      %p99 = scmp.ne.s32.totalorder %s94, %s96
      %p100 = scmp.eq.s32.totalorder %s18, 0
      %p101 = por %p99, %p100
      %p102 = scmp.ne.s32.totalorder %s94, %s96
      %p103 = scmp.eq.s32.totalorder %s23, 1
      %p104 = por %p102, %p103
      %p105 = scmp.ne.s32.totalorder %s96, %s97
      %p106 = scmp.eq.s32.totalorder %s23, 0
      %p107 = por %p105, %p106
      %p108 = scmp.ne.s32.totalorder %s96, %s97
      %p109 = scmp.eq.s32.totalorder %s24, 1
      %p110 = por %p108, %p109
      %p112 = scmp.ne.s32.totalorder %s97, %s111
      %p113 = scmp.eq.s32.totalorder %s24, 0
      %p114 = por %p112, %p113
      %s116 = sadd.s32 %s115, 1
      %p119 = scmp.eq.s32.totalorder %s18, 1
      %p120 = scmp.ne.s32.totalorder %s115, %s117
      %p121 = scmp.eq.s32.totalorder %s18, 0
      %p122 = por %p120, %p121
      %p123 = scmp.ne.s32.totalorder %s115, %s117
      %p124 = scmp.eq.s32.totalorder %s23, 1
      %p125 = por %p123, %p124
      %p126 = scmp.ne.s32.totalorder %s117, %s118
      %p127 = scmp.eq.s32.totalorder %s23, 0
      %p128 = por %p126, %p127
      %p129 = scmp.ne.s32.totalorder %s117, %s118
      %p130 = scmp.eq.s32.totalorder %s24, 1
      %p131 = por %p129, %p130
      %p133 = scmp.ne.s32.totalorder %s118, %s132
      %p134 = scmp.eq.s32.totalorder %s24, 0
      %p135 = por %p133, %p134
      %s137 = sadd.s32 %s136, 1
      %p140 = scmp.eq.s32.totalorder %s18, 1
      %p141 = scmp.ne.s32.totalorder %s136, %s138
      %p142 = scmp.eq.s32.totalorder %s18, 0
      %p143 = por %p141, %p142
      %p144 = scmp.ne.s32.totalorder %s136, %s138
      %p145 = scmp.eq.s32.totalorder %s23, 1
      %p146 = por %p144, %p145
      %p147 = scmp.ne.s32.totalorder %s138, %s139
      %p148 = scmp.eq.s32.totalorder %s23, 0
      %p149 = por %p147, %p148
      %p150 = scmp.ne.s32.totalorder %s138, %s139
      %p151 = scmp.eq.s32.totalorder %s24, 1
      %p152 = por %p150, %p151
      %p154 = scmp.ne.s32.totalorder %s139, %s153
      %p155 = scmp.eq.s32.totalorder %s24, 0
      %p156 = por %p154, %p155
      %s158 = sadd.s32 %s157, 1
      %p161 = scmp.eq.s32.totalorder %s18, 1
      %p162 = scmp.ne.s32.totalorder %s157, %s159
      %p163 = scmp.eq.s32.totalorder %s18, 0
      %p164 = por %p162, %p163
      %p165 = scmp.ne.s32.totalorder %s157, %s159
      %p166 = scmp.eq.s32.totalorder %s23, 1
      %p167 = por %p165, %p166
      %p168 = scmp.ne.s32.totalorder %s159, %s160
      %p169 = scmp.eq.s32.totalorder %s23, 0
      %p170 = por %p168, %p169
      %p171 = scmp.ne.s32.totalorder %s159, %s160
      %p172 = scmp.eq.s32.totalorder %s24, 1
      %p173 = por %p171, %p172
      %p175 = scmp.ne.s32.totalorder %s160, %s174
      %p176 = scmp.eq.s32.totalorder %s24, 0
      %p177 = por %p175, %p176
      %s179 = sadd.s32 %s178, 1
      %p182 = scmp.eq.s32.totalorder %s18, 1
      %p183 = scmp.ne.s32.totalorder %s178, %s180
      %p184 = scmp.eq.s32.totalorder %s18, 0
      %p185 = por %p183, %p184
      %p186 = scmp.ne.s32.totalorder %s178, %s180
      %p187 = scmp.eq.s32.totalorder %s23, 1
      %p188 = por %p186, %p187
      %p189 = scmp.ne.s32.totalorder %s180, %s181
      %p190 = scmp.eq.s32.totalorder %s23, 0
      %p191 = por %p189, %p190
      %p192 = scmp.ne.s32.totalorder %s180, %s181
      %p193 = scmp.eq.s32.totalorder %s24, 1
      %p194 = por %p192, %p193
      %p196 = scmp.ne.s32.totalorder %s181, %s195
      %p197 = scmp.eq.s32.totalorder %s24, 0
      %p198 = por %p196, %p197
      %s200 = sadd.s32 %s199, 1
      %p203 = scmp.eq.s32.totalorder %s18, 1
      %p204 = scmp.ne.s32.totalorder %s199, %s201
      %p205 = scmp.eq.s32.totalorder %s18, 0
      %p206 = por %p204, %p205
      %p207 = scmp.ne.s32.totalorder %s199, %s201
      %p208 = scmp.eq.s32.totalorder %s23, 1
      %p209 = por %p207, %p208
      %p210 = scmp.ne.s32.totalorder %s201, %s202
      %p211 = scmp.eq.s32.totalorder %s23, 0
      %p212 = por %p210, %p211
      %p213 = scmp.ne.s32.totalorder %s201, %s202
      %p214 = scmp.eq.s32.totalorder %s24, 1
      %p215 = por %p213, %p214
      %p217 = scmp.ne.s32.totalorder %s202, %s216
      %p218 = scmp.eq.s32.totalorder %s24, 0
      %p219 = por %p217, %p218
      %s220 = ssub.s32 %s18, %s25
      %p221 = scmp.eq.s32.totalorder %s220, 0
      %s223 = sadd.s32 %s222, 1
      %s224 = scalar_select %p221, %s222, %s223
      %p227 = pneg %p221
      %p228 = scmp.eq.s32.totalorder %s18, 1
      %p229 = por %p227, %p228
      %p230 = scmp.ne.s32.totalorder %s222, %s225
      %p231 = scmp.eq.s32.totalorder %s18, 0
      %p232 = por %p230, %p231
      %p233 = scmp.ne.s32.totalorder %s222, %s225
      %p234 = scmp.eq.s32.totalorder %s23, 1
      %p235 = por %p233, %p234
      %p236 = scmp.ne.s32.totalorder %s225, %s226
      %p237 = scmp.eq.s32.totalorder %s23, 0
      %p238 = por %p236, %p237
      %p239 = scmp.ne.s32.totalorder %s225, %s226
      %p240 = scmp.eq.s32.totalorder %s24, 1
      %p241 = por %p239, %p240
      %p243 = scmp.ne.s32.totalorder %s226, %s242
      %p244 = scmp.eq.s32.totalorder %s24, 0
      %p245 = por %p243, %p244
      %p246 = scmp.le.s32.totalorder 1, %s18
      %p247 = scmp.lt.s32.totalorder %s18, 3
      %p248 = pnand %p246, %p247
      %p249 = pneg %p248
      // Predicated region
      $region9: #{tpu_custom_call.1} parent=5 // pred_check
        _
      $region10: #{tpu_custom_call.1} parent=5 // pred_check_branch
        %251 = sbr.rel (%p248) target = $region12
      $region11: #{tpu_custom_call.1} parent=5 // pred_region
        %s252 = ssub.s32 %s18, 1
        // Predicated region
        $region13: #{tpu_custom_call.1} parent=11 // pred_check
          %p253 = pneg %p65
        $region14: #{tpu_custom_call.1} parent=11 // pred_check_branch
          %255 = sbr.rel (%p253) target = $region16
        $region15: #{tpu_custom_call.1} parent=11 // pred_region
          _
        $region16: #{tpu_custom_call.1} parent=11 // pred_fallthru
          _
        // Predicated region
        $region17: #{tpu_custom_call.1} parent=11 // pred_check
          %p256 = pneg %p86
        $region18: #{tpu_custom_call.1} parent=11 // pred_check_branch
          %258 = sbr.rel (%p256) target = $region20
        $region19: #{tpu_custom_call.1} parent=11 // pred_region
          _
        $region20: #{tpu_custom_call.1} parent=11 // pred_fallthru
          _
        // Predicated region
        $region21: #{tpu_custom_call.1} parent=11 // pred_check
          %p259 = pneg %p107
        $region22: #{tpu_custom_call.1} parent=11 // pred_check_branch
          %261 = sbr.rel (%p259) target = $region24
        $region23: #{tpu_custom_call.1} parent=11 // pred_region
          _
        $region24: #{tpu_custom_call.1} parent=11 // pred_fallthru
          _
        // Predicated region
        $region25: #{tpu_custom_call.1} parent=11 // pred_check
          %p262 = pneg %p128
        $region26: #{tpu_custom_call.1} parent=11 // pred_check_branch
          %264 = sbr.rel (%p262) target = $region28
        $region27: #{tpu_custom_call.1} parent=11 // pred_region
          _
        $region28: #{tpu_custom_call.1} parent=11 // pred_fallthru
          _
        // Predicated region
        $region29: #{tpu_custom_call.1} parent=11 // pred_check
          %p265 = pneg %p149
        $region30: #{tpu_custom_call.1} parent=11 // pred_check_branch
          %267 = sbr.rel (%p265) target = $region32
        $region31: #{tpu_custom_call.1} parent=11 // pred_region
          _
        $region32: #{tpu_custom_call.1} parent=11 // pred_fallthru
          _
        // Predicated region
        $region33: #{tpu_custom_call.1} parent=11 // pred_check
          %p268 = pneg %p170
        $region34: #{tpu_custom_call.1} parent=11 // pred_check_branch
          %270 = sbr.rel (%p268) target = $region36
        $region35: #{tpu_custom_call.1} parent=11 // pred_region
          _
        $region36: #{tpu_custom_call.1} parent=11 // pred_fallthru
          _
        // Predicated region
        $region37: #{tpu_custom_call.1} parent=11 // pred_check
          %p271 = pneg %p191
        $region38: #{tpu_custom_call.1} parent=11 // pred_check_branch
          %273 = sbr.rel (%p271) target = $region40
        $region39: #{tpu_custom_call.1} parent=11 // pred_region
          _
        $region40: #{tpu_custom_call.1} parent=11 // pred_fallthru
          _
        // Predicated region
        $region41: #{tpu_custom_call.1} parent=11 // pred_check
          %p274 = pneg %p212
        $region42: #{tpu_custom_call.1} parent=11 // pred_check_branch
          %276 = sbr.rel (%p274) target = $region44
        $region43: #{tpu_custom_call.1} parent=11 // pred_region
          _
        $region44: #{tpu_custom_call.1} parent=11 // pred_fallthru
          _
      $region12: #{tpu_custom_call.1} parent=5 // pred_fallthru
        _
      %p277 = scmp.lt.s32.totalorder %s18, 2
      // Predicated region
      $region45: #{tpu_custom_call.1} parent=5 // pred_check
        %p278 = pneg %p277
      $region46: #{tpu_custom_call.1} parent=5 // pred_check_branch
        %280 = sbr.rel (%p278) target = $region48
      $region47: #{tpu_custom_call.1} parent=5 // pred_region
        // Predicated region
        $region49: #{tpu_custom_call.1} parent=47 // pred_check
          %p281 = pneg %p38
        $region50: #{tpu_custom_call.1} parent=47 // pred_check_branch
          %283 = sbr.rel (%p281) target = $region52
        $region51: #{tpu_custom_call.1} parent=47 // pred_region
          %p284 = scmp.lt.s32.totalorder %s18, 1
          %s285 = scalar_select %p284, %s18, 1
          %s286 = smul.addr %s285, 2
          %s287 = smul.addr %s286, 8
          %s288 = scalar_lea.vmem %s0, %s287
        $region52: #{tpu_custom_call.1} parent=47 // pred_fallthru
          _
      $region48: #{tpu_custom_call.1} parent=5 // pred_fallthru
        _
      %p289 = scmp.le.s32.totalorder 1, %s18
      %p290 = scmp.lt.s32.totalorder %s18, 3
      %p291 = pnand %p289, %p290
      %p292 = pneg %p291
      // Predicated region
      $region53: #{tpu_custom_call.1} parent=5 // pred_check
        _
      $region54: #{tpu_custom_call.1} parent=5 // pred_check_branch
        %294 = sbr.rel (%p291) target = $region56
      $region55: #{tpu_custom_call.1} parent=5 // pred_region
        %s295 = ssub.s32 %s18, 1
        %p296 = scmp.lt.s32.totalorder %s23, 1
        %s297 = scalar_select %p296, %s23, 1
        %s298 = smul.addr %s297, 2
        %s299 = smul.addr %s298, 8
        %s300 = scalar_lea.vmem %s0, %s299
        %p301 = pneg %p44
        %p302 = pneg %p41
        %p303 = pneg %p65
        %p304 = pneg %p62
        %p305 = pneg %p86
        %p306 = pneg %p83
        %p307 = pneg %p107
        %p308 = pneg %p104
        %p309 = pneg %p128
        %p310 = pneg %p125
        %p311 = pneg %p149
        %p312 = pneg %p146
        %p313 = pneg %p170
        %p314 = pneg %p167
        %p315 = pneg %p191
        %p316 = pneg %p188
        %p317 = pneg %p212
        %p318 = pneg %p209
        %p319 = pneg %p238
        %p320 = pneg %p235
        %s321 = sand.u32 %s225, 1
        %s322 = scalar_lea.sflag [#allocation8], %s321
        %s323 = sand.u32 %s225, 1
        %s324 = smul.addr %s323, 16
        %s325 = scalar_lea.vmem [#allocation7], %s324
        %p326 = scmp.lt.s32.totalorder %s23, 1
        %s327 = scalar_select %p326, %s23, 1
        %s328 = smul.addr %s327, 2
        %s329 = smul.addr %s328, 8
        %s330 = scalar_lea.vmem %s0, %s329
        %v332 = vlaneseq
        %v333 = vand.u32 %v332, 127
        %v334 = vadd.s32 %v333, 128
        %vm335 = vcmp.lt.s32.totalorder %v333, 0
        %v336 = vsub.s32 0, %v333
        %v337 = vsel %vm335, %v336, %v333
        %v338 = vshrl.u32 %v337, 4
        %v339 = vand.u32 %v337, 15
        %v340 = vsub.s32 0, %v339
        %v341 = vsel %vm335, %v340, %v339
        %vm342 = vcmp.lt.s32.totalorder %v334, 0
        %v343 = vsub.s32 0, %v334
        %v344 = vsel %vm342, %v343, %v334
        %v345 = vshrl.u32 %v344, 4
        %v346 = vand.u32 %v344, 15
        %v347 = vsub.s32 0, %v346
        %v348 = vsel %vm342, %v347, %v346
        %vm349 = vcmp.ne.s32.totalorder %v341, 0
        %vm350 = vcmp.ne.s32.totalorder %v348, 0
        %vm351 = vcmp.lt.s32.totalorder %v341, 0
        %vm352 = vcmp.lt.s32.totalorder %v348, 0
        %vm353 = vmand %vm351, %vm349
        %vm354 = vmand %vm352, %vm350
        %v355 = vadd.s32 %v341, 16
        %v356 = vadd.s32 %v348, 16
        %v357 = vsel %vm353, %v355, %v341
        %v358 = vsel %vm354, %v356, %v348
        %vm359 = vcmp.ge.s32.totalorder %v357, 1
        %vm360 = vcmp.ge.s32.totalorder %v358, 1
        %vm361 = vcmp.le.s32.totalorder %v357, 14
        %vm362 = vcmp.le.s32.totalorder %v358, 14
        %v363 = vld [vmem:[%s330] sm:$0xff]
        %v364 = vld [vmem:[%s330 + $0x8] sm:$0xff]
        %vm365 = vcmask 125952
        %366 = vst.msk [vmem:[#allocation2] sm:$0xf] %vm365, 0
        %v367 = vpack.c.bf16 %v363, %v363
        %v368 = vpack.c.bf16 %v364, %v364
        %v371 = vunpack.c.l.b16 %v367
        %v372 = vunpack.c.l.b16 %v368
        %v373 = vpack.c.b16 %v372, %v371
        %374 = vrot.lane.b32.xlu0 %v373, 16
        %v375 = vpop.permute.xlu0 %374
        %v376 = vrot.slane %v375, 4
        %vm377 = vcmask 130048
        %v378 = vsel %vm377, %v376, %v375
        %vm381 = vcmask 1043584
        %vm382 = vcmask 1047556
        %vm383 = vmor %vm382, %vm381
        %384 = vst.msk [vmem:[#allocation2] sm:$0xff] %vm383, %v378
        %385 = vst.msk [vmem:[#allocation2 + $0x8] sm:$0xf] %vm365, %v376
        %vm386 = vcmask 257152
        %387 = vst.msk [vmem:[#allocation2 + $0x8] sm:$0xf] %vm386, 0
        %388 = vrot.lane.b32.xlu0 %v363, 1
        %v389 = vpop.permute.xlu0 %388
        %390 = vrot.lane.b32.xlu0 %v364, 1
        %v391 = vpop.permute.xlu0 %390
        %vm392 = vcmp.lt.s32.totalorder %v333, 1
        %v393 = vsel %vm392, %v389, %v391
        %v394 = vsel %vm392, %v391, %v389
        %v395 = vsel %vm359, 1, 0
        %v396 = vsel %vm360, 1, 0
        %vm397 = vcmp.eq.s32.totalorder %v395, 1
        %vm398 = vcmp.eq.s32.totalorder %v396, 1
        %v399 = vsel %vm397, %v394, 0.0
        %v400 = vsel %vm398, %v393, 0.0
        %401 = vst.msk [vmem:[#allocation3] sm:$0xf] %vm365, 0
        %v402 = vpack.c.bf16 %v399, %v399
        %v403 = vpack.c.bf16 %v400, %v400
        %v406 = vunpack.c.l.b16 %v402
        %v407 = vunpack.c.l.b16 %v403
        %v408 = vpack.c.b16 %v407, %v406
        %409 = vrot.lane.b32.xlu0 %v408, 16
        %v410 = vpop.permute.xlu0 %409
        %v411 = vrot.slane %v410, 4
        %v412 = vsel %vm377, %v411, %v410
        %415 = vst.msk [vmem:[#allocation3] sm:$0xff] %vm383, %v412
        %416 = vst.msk [vmem:[#allocation3 + $0x8] sm:$0xf] %vm365, %v411
        %417 = vst.msk [vmem:[#allocation3 + $0x8] sm:$0xf] %vm386, 0
        %418 = vrot.lane.b32.xlu0 %v363, 127
        %v419 = vpop.permute.xlu0 %418
        %420 = vrot.lane.b32.xlu0 %v364, 127
        %v421 = vpop.permute.xlu0 %420
        %vm422 = vcmp.lt.s32.totalorder %v333, 127
        %v423 = vsel %vm422, %v419, %v421
        %v424 = vsel %vm422, %v421, %v419
        %v425 = vsel %vm361, 1, 0
        %v426 = vsel %vm362, 1, 0
        %vm427 = vcmp.eq.s32.totalorder %v425, 1
        %vm428 = vcmp.eq.s32.totalorder %v426, 1
        %v429 = vsel %vm427, %v423, 0.0
        %v430 = vsel %vm428, %v424, 0.0
        %431 = vst.msk [vmem:[#allocation4] sm:$0xf] %vm365, 0
        %v432 = vpack.c.bf16 %v429, %v429
        %v433 = vpack.c.bf16 %v430, %v430
        %v436 = vunpack.c.l.b16 %v432
        %v437 = vunpack.c.l.b16 %v433
        %v438 = vpack.c.b16 %v437, %v436
        %439 = vrot.lane.b32.xlu0 %v438, 16
        %v440 = vpop.permute.xlu0 %439
        %v441 = vrot.slane %v440, 4
        %v442 = vsel %vm377, %v441, %v440
        %445 = vst.msk [vmem:[#allocation4] sm:$0xff] %vm383, %v442
        %446 = vst.msk [vmem:[#allocation4 + $0x8] sm:$0xf] %vm365, %v441
        %447 = vst.msk [vmem:[#allocation4 + $0x8] sm:$0xf] %vm386, 0
        %448 = vst.msk [vmem:[#allocation5] sm:$0xf] %vm365, 0
        %449 = vst.msk [vmem:[#allocation5 + $0x8] sm:$0xf] %vm386, 0
        %v450 = vld [vmem:[%s1] sm:$0xf]
        %v451 = vld [vmem:[%s2] sm:$0xff]
        %v452 = vld [vmem:[#allocation3] sm:$0xf]
        %v453 = vld [vmem:[#allocation2] sm:$0xf]
        %v454 = vld [vmem:[#allocation4] sm:$0xf]
        %v455 = vld [vmem:[#allocation3] sm:$0xff]
        %v456 = vld [vmem:[#allocation2] sm:$0xff]
        %v457 = vld [vmem:[#allocation4] sm:$0xff]
        %v459 = vunpack.c.l.b16 %v453
        %v460 = vpack.c.b16 %v459, %v459
        %v462 = vunpack.c.l.b16 %v455
        %v463 = vunpack.c.h.b16 %v455
        %v464 = vpack.c.b16 %v462, %v462
        %v465 = vpack.c.b16 %v463, %v463
        %466 = vrot.lane.b32.xlu0 %v464, 112
        %v467 = vpop.permute.xlu0 %466
        %468 = vrot.lane.b32.xlu0 %v465, 112
        %v469 = vpop.permute.xlu0 %468
        %vm470 = vcmask 916480
        %v471 = vsel %vm470, %v467, %v469
        %v473 = vunpack.c.l.b16 %v456
        %v474 = vunpack.c.h.b16 %v456
        %v475 = vpack.c.b16 %v473, %v473
        %v476 = vpack.c.b16 %v474, %v474
        %477 = vrot.lane.b32.xlu0 %v475, 112
        %v478 = vpop.permute.xlu0 %477
        %479 = vrot.lane.b32.xlu0 %v476, 112
        %v480 = vpop.permute.xlu0 %479
        %v481 = vsel %vm470, %v478, %v480
        %v483 = vunpack.c.l.b16 %v457
        %v484 = vunpack.c.h.b16 %v457
        %v485 = vpack.c.b16 %v483, %v483
        %v486 = vpack.c.b16 %v484, %v484
        %487 = vrot.lane.b32.xlu0 %v485, 112
        %v488 = vpop.permute.xlu0 %487
        %489 = vrot.lane.b32.xlu0 %v486, 112
        %v490 = vpop.permute.xlu0 %489
        %v491 = vsel %vm470, %v488, %v490
        %492 = vrot.lane.b32.xlu0 %v464, 96
        %v493 = vpop.permute.xlu0 %492
        %494 = vrot.lane.b32.xlu0 %v465, 96
        %v495 = vpop.permute.xlu0 %494
        %vm496 = vcmask 785408
        %v497 = vsel %vm496, %v493, %v495
        %498 = vrot.lane.b32.xlu0 %v475, 96
        %v499 = vpop.permute.xlu0 %498
        %500 = vrot.lane.b32.xlu0 %v476, 96
        %v501 = vpop.permute.xlu0 %500
        %v502 = vsel %vm496, %v499, %v501
        %503 = vrot.lane.b32.xlu0 %v485, 96
        %v504 = vpop.permute.xlu0 %503
        %505 = vrot.lane.b32.xlu0 %v486, 96
        %v506 = vpop.permute.xlu0 %505
        %v507 = vsel %vm496, %v504, %v506
        %vm508 = vcmask 1043456
        %v511 = vsel %vm508, %v452, %v460
        %v515 = vsel %vm508, %v454, %v471
        %v519 = vsel %vm508, %v481, %v491
        %v523 = vsel %vm508, %v497, %v502
        %526 = vset.pattern.permute.xlu0 0
        %527 = vperm.xlu0 %526, %v451
        %v528 = vpop.permute.xlu0 %527
        %vm530 = vcmask 588800
        %v532 = vsel %vm530, %v450, 0
        %v535 = vsel %vm508, %v507, 0
        %537 = vmatprep.subr.bf16.mxu0 0
        %538 = vmatpush1.bf16.msra.mxu0 %v511
        %539 = vmatprep.subr.bf16.mxu0 0
        %540 = vmatpush1.bf16.msra.mxu0 %v515
        %541 = vmatprep.subr.bf16.mxu0 0
        %542 = vmatpush1.bf16.msra.mxu0 %v519
        %543 = vmatprep.subr.bf16.mxu0 0
        %544 = vmatpush1.bf16.msra.mxu0 %v523
        %545 = vmatprep.subr.bf16.mxu0 0
        %546 = vmatpush1.bf16.msra.mxu0 %v535
        %547 = vmatprep.subr.bf16.mxu0 0
        %548 = vmatpush1.bf16.msra.mxu0 0
        %549 = vmatprep.subr.bf16.mxu0 0
        %550 = vmatpush1.bf16.msra.mxu0 0
        %551 = vmatprep.subr.bf16.mxu0 0
        %552 = vmatpush1.bf16.msra.mxu0 0
        %553 = vmatprep.subr.bf16.mxu0 0
        %554 = vmatpush1.bf16.msra.mxu0 0
        %555 = vmatprep.subr.bf16.mxu0 0
        %556 = vmatpush1.bf16.msra.mxu0 0
        %557 = vmatprep.subr.bf16.mxu0 0
        %558 = vmatpush1.bf16.msra.mxu0 0
        %559 = vmatprep.subr.bf16.mxu0 0
        %560 = vmatpush1.bf16.msra.mxu0 0
        %561 = vmatprep.subr.bf16.mxu0 0
        %562 = vmatpush1.bf16.msra.mxu0 0
        %563 = vmatprep.subr.bf16.mxu0 0
        %564 = vmatpush1.bf16.msra.mxu0 0
        %565 = vmatprep.subr.bf16.mxu0 0
        %566 = vmatpush1.bf16.msra.mxu0 0
        %567 = vmatprep.subr.bf16.mxu0 0
        %568 = vmatpush1.bf16.msra.mxu0 0
        %569 = vmatprep.mubr.bf16.mxu0 0
        %570 = vmatmul.mubr.bf16.gmra.mrb[0].mxu0 %v532
        %v571 = vpop.f32.mrb[0].mxu0
        %v572 = vadd.f32 %v528, %v571
        %v573 = vpop.f32.mrb[0].mxu0
        %v574 = vpop.f32.mrb[0].mxu0
        %v575 = vpop.f32.mrb[0].mxu0
        %576 = vdwg.mxu0
        %v577 = vmax.f32 %v572, 0.0
        %v578 = vpack.c.bf16 %v577, %v577
        %v580 = vunpack.c.l.b16 %v578
        %v581 = vpack.c.b16 %v580, %v580
        %582 = vrot.lane.b32.xlu0 %v581, 16
        %v583 = vpop.permute.xlu0 %582
        %v584 = vrot.slane %v583, 4
        %v585 = vsel %vm377, %v584, %v583
        %vm587 = vcmask 130052
        %vm588 = vmor %vm587, %vm381
        %589 = vst.msk [vmem:[#allocation5] sm:$0xff] %vm588, %v585
        %v590 = vld [vmem:[#allocation3 + $0x4] sm:$0xf]
        %v591 = vld [vmem:[#allocation2 + $0x4] sm:$0xf]
        %v592 = vld [vmem:[#allocation4 + $0x4] sm:$0xf]
        %v593 = vld [vmem:[#allocation3 + $0x4] sm:$0xff]
        %v594 = vld [vmem:[#allocation2 + $0x4] sm:$0xff]
        %v595 = vld [vmem:[#allocation4 + $0x4] sm:$0xff]
        %v597 = vunpack.c.l.b16 %v591
        %v598 = vpack.c.b16 %v597, %v597
        %v600 = vunpack.c.l.b16 %v593
        %v601 = vunpack.c.h.b16 %v593
        %v602 = vpack.c.b16 %v600, %v600
        %v603 = vpack.c.b16 %v601, %v601
        %604 = vrot.lane.b32.xlu0 %v602, 112
        %v605 = vpop.permute.xlu0 %604
        %606 = vrot.lane.b32.xlu0 %v603, 112
        %v607 = vpop.permute.xlu0 %606
        %v608 = vsel %vm470, %v605, %v607
        %v610 = vunpack.c.l.b16 %v594
        %v611 = vunpack.c.h.b16 %v594
        %v612 = vpack.c.b16 %v610, %v610
        %v613 = vpack.c.b16 %v611, %v611
        %614 = vrot.lane.b32.xlu0 %v612, 112
        %v615 = vpop.permute.xlu0 %614
        %616 = vrot.lane.b32.xlu0 %v613, 112
        %v617 = vpop.permute.xlu0 %616
        %v618 = vsel %vm470, %v615, %v617
        %v620 = vunpack.c.l.b16 %v595
        %v621 = vunpack.c.h.b16 %v595
        %v622 = vpack.c.b16 %v620, %v620
        %v623 = vpack.c.b16 %v621, %v621
        %624 = vrot.lane.b32.xlu0 %v622, 112
        %v625 = vpop.permute.xlu0 %624
        %626 = vrot.lane.b32.xlu0 %v623, 112
        %v627 = vpop.permute.xlu0 %626
        %v628 = vsel %vm470, %v625, %v627
        %629 = vrot.lane.b32.xlu0 %v602, 96
        %v630 = vpop.permute.xlu0 %629
        %631 = vrot.lane.b32.xlu0 %v603, 96
        %v632 = vpop.permute.xlu0 %631
        %v633 = vsel %vm496, %v630, %v632
        %634 = vrot.lane.b32.xlu0 %v612, 96
        %v635 = vpop.permute.xlu0 %634
        %636 = vrot.lane.b32.xlu0 %v613, 96
        %v637 = vpop.permute.xlu0 %636
        %v638 = vsel %vm496, %v635, %v637
        %639 = vrot.lane.b32.xlu0 %v622, 96
        %v640 = vpop.permute.xlu0 %639
        %641 = vrot.lane.b32.xlu0 %v623, 96
        %v642 = vpop.permute.xlu0 %641
        %v643 = vsel %vm496, %v640, %v642
        %v646 = vsel %vm508, %v590, %v598
        %v650 = vsel %vm508, %v592, %v608
        %v654 = vsel %vm508, %v618, %v628
        %v658 = vsel %vm508, %v633, %v638
        %v661 = vsel %vm508, %v643, 0
        %663 = vmatprep.subr.bf16.mxu0 0
        %664 = vmatpush1.bf16.msra.mxu0 %v646
        %665 = vmatprep.subr.bf16.mxu0 0
        %666 = vmatpush1.bf16.msra.mxu0 %v650
        %667 = vmatprep.subr.bf16.mxu0 0
        %668 = vmatpush1.bf16.msra.mxu0 %v654
        %669 = vmatprep.subr.bf16.mxu0 0
        %670 = vmatpush1.bf16.msra.mxu0 %v658
        %671 = vmatprep.subr.bf16.mxu0 0
        %672 = vmatpush1.bf16.msra.mxu0 %v661
        %673 = vmatprep.subr.bf16.mxu0 0
        %674 = vmatpush1.bf16.msra.mxu0 0
        %675 = vmatprep.subr.bf16.mxu0 0
        %676 = vmatpush1.bf16.msra.mxu0 0
        %677 = vmatprep.subr.bf16.mxu0 0
        %678 = vmatpush1.bf16.msra.mxu0 0
        %679 = vmatprep.subr.bf16.mxu0 0
        %680 = vmatpush1.bf16.msra.mxu0 0
        %681 = vmatprep.subr.bf16.mxu0 0
        %682 = vmatpush1.bf16.msra.mxu0 0
        %683 = vmatprep.subr.bf16.mxu0 0
        %684 = vmatpush1.bf16.msra.mxu0 0
        %685 = vmatprep.subr.bf16.mxu0 0
        %686 = vmatpush1.bf16.msra.mxu0 0
        %687 = vmatprep.subr.bf16.mxu0 0
        %688 = vmatpush1.bf16.msra.mxu0 0
        %689 = vmatprep.subr.bf16.mxu0 0
        %690 = vmatpush1.bf16.msra.mxu0 0
        %691 = vmatprep.subr.bf16.mxu0 0
        %692 = vmatpush1.bf16.msra.mxu0 0
        %693 = vmatprep.subr.bf16.mxu0 0
        %694 = vmatpush1.bf16.msra.mxu0 0
        %695 = vmatprep.mubr.bf16.mxu0 0
        %696 = vmatmul.mubr.bf16.gmra.mrb[0].mxu0 %v532
        %v697 = vpop.f32.mrb[0].mxu0
        %v698 = vadd.f32 %v528, %v697
        %v699 = vpop.f32.mrb[0].mxu0
        %v700 = vpop.f32.mrb[0].mxu0
        %v701 = vpop.f32.mrb[0].mxu0
        %702 = vdwg.mxu0
        %v703 = vmax.f32 %v698, 0.0
        %v704 = vpack.c.bf16 %v703, %v703
        %v706 = vunpack.c.l.b16 %v704
        %v707 = vpack.c.b16 %v706, %v706
        %708 = vrot.lane.b32.xlu0 %v707, 16
        %v709 = vpop.permute.xlu0 %708
        %v710 = vrot.slane %v709, 4
        %v711 = vsel %vm377, %v710, %v709
        %713 = vst.msk [vmem:[#allocation5 + $0x4] sm:$0xff] %vm588, %v711
        %v714 = vld [vmem:[#allocation5] sm:$0xff]
        %v715 = vld [vmem:[#allocation5 + $0x8] sm:$0xf]
        %v716 = vunpack.c.l.bf16 %v714
        %v717 = vunpack.c.h.bf16 %v714
        %v718 = vunpack.c.l.bf16 %v715
        %722 = vrot.lane.b32.xlu0 %v716, 112
        %v723 = vpop.permute.xlu0 %722
        %724 = vrot.lane.b32.xlu0 %v717, 112
        %v725 = vpop.permute.xlu0 %724
        %726 = vrot.lane.b32.xlu0 %v718, 112
        %v727 = vpop.permute.xlu0 %726
        %vm728 = vcmask 916480
        %v729 = vsel %vm728, %v723, %v725
        %v730 = vsel %vm728, %v725, %v727
        %733 = vrot.lane.b32.xlu0 %v729, 1
        %v734 = vpop.permute.xlu0 %733
        %735 = vrot.lane.b32.xlu0 %v730, 1
        %v736 = vpop.permute.xlu0 %735
        %v737 = vsel %vm392, %v734, %v736
        %v738 = vsel %vm392, %v736, %v734
        %v739 = vsel %vm397, %v738, 0.0
        %v740 = vsel %vm398, %v737, 0.0
        %741 = vst.msk [vmem:[#allocation3] sm:$0xf] %vm365, 0
        %v742 = vpack.c.bf16 %v739, %v739
        %v743 = vpack.c.bf16 %v740, %v740
        %v746 = vunpack.c.l.b16 %v742
        %v747 = vunpack.c.l.b16 %v743
        %v748 = vpack.c.b16 %v747, %v746
        %749 = vrot.lane.b32.xlu0 %v748, 16
        %v750 = vpop.permute.xlu0 %749
        %v751 = vrot.slane %v750, 4
        %v752 = vsel %vm377, %v751, %v750
        %755 = vst.msk [vmem:[#allocation3] sm:$0xff] %vm383, %v752
        %756 = vst.msk [vmem:[#allocation3 + $0x8] sm:$0xf] %vm365, %v751
        %757 = vst.msk [vmem:[#allocation3 + $0x8] sm:$0xf] %vm386, 0
        %758 = vrot.lane.b32.xlu0 %v729, 127
        %v759 = vpop.permute.xlu0 %758
        %760 = vrot.lane.b32.xlu0 %v730, 127
        %v761 = vpop.permute.xlu0 %760
        %v762 = vsel %vm422, %v759, %v761
        %v763 = vsel %vm422, %v761, %v759
        %v764 = vsel %vm427, %v762, 0.0
        %v765 = vsel %vm428, %v763, 0.0
        %766 = vst.msk [vmem:[#allocation4] sm:$0xf] %vm365, 0
        %v767 = vpack.c.bf16 %v764, %v764
        %v768 = vpack.c.bf16 %v765, %v765
        %v771 = vunpack.c.l.b16 %v767
        %v772 = vunpack.c.l.b16 %v768
        %v773 = vpack.c.b16 %v772, %v771
        %774 = vrot.lane.b32.xlu0 %v773, 16
        %v775 = vpop.permute.xlu0 %774
        %v776 = vrot.slane %v775, 4
        %v777 = vsel %vm377, %v776, %v775
        %780 = vst.msk [vmem:[#allocation4] sm:$0xff] %vm383, %v777
        %781 = vst.msk [vmem:[#allocation4 + $0x8] sm:$0xf] %vm365, %v776
        %782 = vst.msk [vmem:[#allocation4 + $0x8] sm:$0xf] %vm386, 0
        %v783 = vld [vmem:[%s3] sm:$0xf]
        %v784 = vld [vmem:[%s4] sm:$0xff]
        %v785 = vld [vmem:[#allocation3] sm:$0xf]
        %v786 = vld [vmem:[#allocation5] sm:$0xf]
        %v787 = vld [vmem:[#allocation4] sm:$0xf]
        %v788 = vld [vmem:[#allocation3] sm:$0xff]
        %v789 = vld [vmem:[#allocation5] sm:$0xff]
        %v790 = vld [vmem:[#allocation4] sm:$0xff]
        %v792 = vunpack.c.l.b16 %v786
        %v793 = vpack.c.b16 %v792, %v792
        %v795 = vunpack.c.l.b16 %v788
        %v796 = vunpack.c.h.b16 %v788
        %v797 = vpack.c.b16 %v795, %v795
        %v798 = vpack.c.b16 %v796, %v796
        %799 = vrot.lane.b32.xlu0 %v797, 112
        %v800 = vpop.permute.xlu0 %799
        %801 = vrot.lane.b32.xlu0 %v798, 112
        %v802 = vpop.permute.xlu0 %801
        %v803 = vsel %vm470, %v800, %v802
        %v805 = vunpack.c.l.b16 %v789
        %v806 = vunpack.c.h.b16 %v789
        %v807 = vpack.c.b16 %v805, %v805
        %v808 = vpack.c.b16 %v806, %v806
        %809 = vrot.lane.b32.xlu0 %v807, 112
        %v810 = vpop.permute.xlu0 %809
        %811 = vrot.lane.b32.xlu0 %v808, 112
        %v812 = vpop.permute.xlu0 %811
        %v813 = vsel %vm470, %v810, %v812
        %v815 = vunpack.c.l.b16 %v790
        %v816 = vunpack.c.h.b16 %v790
        %v817 = vpack.c.b16 %v815, %v815
        %v818 = vpack.c.b16 %v816, %v816
        %819 = vrot.lane.b32.xlu0 %v817, 112
        %v820 = vpop.permute.xlu0 %819
        %821 = vrot.lane.b32.xlu0 %v818, 112
        %v822 = vpop.permute.xlu0 %821
        %v823 = vsel %vm470, %v820, %v822
        %824 = vrot.lane.b32.xlu0 %v797, 96
        %v825 = vpop.permute.xlu0 %824
        %826 = vrot.lane.b32.xlu0 %v798, 96
        %v827 = vpop.permute.xlu0 %826
        %v828 = vsel %vm496, %v825, %v827
        %829 = vrot.lane.b32.xlu0 %v807, 96
        %v830 = vpop.permute.xlu0 %829
        %831 = vrot.lane.b32.xlu0 %v808, 96
        %v832 = vpop.permute.xlu0 %831
        %v833 = vsel %vm496, %v830, %v832
        %834 = vrot.lane.b32.xlu0 %v817, 96
        %v835 = vpop.permute.xlu0 %834
        %836 = vrot.lane.b32.xlu0 %v818, 96
        %v837 = vpop.permute.xlu0 %836
        %v838 = vsel %vm496, %v835, %v837
        %v841 = vsel %vm508, %v785, %v793
        %v845 = vsel %vm508, %v787, %v803
        %v849 = vsel %vm508, %v813, %v823
        %v853 = vsel %vm508, %v828, %v833
        %856 = vset.pattern.permute.xlu0 0
        %857 = vperm.xlu0 %856, %v784
        %v858 = vpop.permute.xlu0 %857
        %v861 = vsel %vm530, %v783, 0
        %v864 = vsel %vm508, %v838, 0
        %866 = vmatprep.subr.bf16.mxu0 0
        %867 = vmatpush1.bf16.msra.mxu0 %v841
        %868 = vmatprep.subr.bf16.mxu0 0
        %869 = vmatpush1.bf16.msra.mxu0 %v845
        %870 = vmatprep.subr.bf16.mxu0 0
        %871 = vmatpush1.bf16.msra.mxu0 %v849
        %872 = vmatprep.subr.bf16.mxu0 0
        %873 = vmatpush1.bf16.msra.mxu0 %v853
        %874 = vmatprep.subr.bf16.mxu0 0
        %875 = vmatpush1.bf16.msra.mxu0 %v864
        %876 = vmatprep.subr.bf16.mxu0 0
        %877 = vmatpush1.bf16.msra.mxu0 0
        %878 = vmatprep.subr.bf16.mxu0 0
        %879 = vmatpush1.bf16.msra.mxu0 0
        %880 = vmatprep.subr.bf16.mxu0 0
        %881 = vmatpush1.bf16.msra.mxu0 0
        %882 = vmatprep.subr.bf16.mxu0 0
        %883 = vmatpush1.bf16.msra.mxu0 0
        %884 = vmatprep.subr.bf16.mxu0 0
        %885 = vmatpush1.bf16.msra.mxu0 0
        %886 = vmatprep.subr.bf16.mxu0 0
        %887 = vmatpush1.bf16.msra.mxu0 0
        %888 = vmatprep.subr.bf16.mxu0 0
        %889 = vmatpush1.bf16.msra.mxu0 0
        %890 = vmatprep.subr.bf16.mxu0 0
        %891 = vmatpush1.bf16.msra.mxu0 0
        %892 = vmatprep.subr.bf16.mxu0 0
        %893 = vmatpush1.bf16.msra.mxu0 0
        %894 = vmatprep.subr.bf16.mxu0 0
        %895 = vmatpush1.bf16.msra.mxu0 0
        %896 = vmatprep.subr.bf16.mxu0 0
        %897 = vmatpush1.bf16.msra.mxu0 0
        %898 = vmatprep.mubr.bf16.mxu0 0
        %899 = vmatmul.mubr.bf16.gmra.mrb[0].mxu0 %v861
        %v900 = vpop.f32.mrb[0].mxu0
        %v901 = vadd.f32 %v858, %v900
        %v902 = vpop.f32.mrb[0].mxu0
        %v903 = vpop.f32.mrb[0].mxu0
        %v904 = vpop.f32.mrb[0].mxu0
        %905 = vdwg.mxu0
        %906 = vst [vmem:[#allocation6] sm:$0xff] %v901
        %v907 = vld [vmem:[#allocation3 + $0x4] sm:$0xf]
        %v908 = vld [vmem:[#allocation5 + $0x4] sm:$0xf]
        %v909 = vld [vmem:[#allocation4 + $0x4] sm:$0xf]
        %v910 = vld [vmem:[#allocation3 + $0x4] sm:$0xff]
        %v911 = vld [vmem:[#allocation5 + $0x4] sm:$0xff]
        %v912 = vld [vmem:[#allocation4 + $0x4] sm:$0xff]
        %v914 = vunpack.c.l.b16 %v908
        %v915 = vpack.c.b16 %v914, %v914
        %v917 = vunpack.c.l.b16 %v910
        %v918 = vunpack.c.h.b16 %v910
        %v919 = vpack.c.b16 %v917, %v917
        %v920 = vpack.c.b16 %v918, %v918
        %921 = vrot.lane.b32.xlu0 %v919, 112
        %v922 = vpop.permute.xlu0 %921
        %923 = vrot.lane.b32.xlu0 %v920, 112
        %v924 = vpop.permute.xlu0 %923
        %v925 = vsel %vm470, %v922, %v924
        %v927 = vunpack.c.l.b16 %v911
        %v928 = vunpack.c.h.b16 %v911
        %v929 = vpack.c.b16 %v927, %v927
        %v930 = vpack.c.b16 %v928, %v928
        %931 = vrot.lane.b32.xlu0 %v929, 112
        %v932 = vpop.permute.xlu0 %931
        %933 = vrot.lane.b32.xlu0 %v930, 112
        %v934 = vpop.permute.xlu0 %933
        %v935 = vsel %vm470, %v932, %v934
        %v937 = vunpack.c.l.b16 %v912
        %v938 = vunpack.c.h.b16 %v912
        %v939 = vpack.c.b16 %v937, %v937
        %v940 = vpack.c.b16 %v938, %v938
        %941 = vrot.lane.b32.xlu0 %v939, 112
        %v942 = vpop.permute.xlu0 %941
        %943 = vrot.lane.b32.xlu0 %v940, 112
        %v944 = vpop.permute.xlu0 %943
        %v945 = vsel %vm470, %v942, %v944
        %946 = vrot.lane.b32.xlu0 %v919, 96
        %v947 = vpop.permute.xlu0 %946
        %948 = vrot.lane.b32.xlu0 %v920, 96
        %v949 = vpop.permute.xlu0 %948
        %v950 = vsel %vm496, %v947, %v949
        %951 = vrot.lane.b32.xlu0 %v929, 96
        %v952 = vpop.permute.xlu0 %951
        %953 = vrot.lane.b32.xlu0 %v930, 96
        %v954 = vpop.permute.xlu0 %953
        %v955 = vsel %vm496, %v952, %v954
        %956 = vrot.lane.b32.xlu0 %v939, 96
        %v957 = vpop.permute.xlu0 %956
        %958 = vrot.lane.b32.xlu0 %v940, 96
        %v959 = vpop.permute.xlu0 %958
        %v960 = vsel %vm496, %v957, %v959
        %v963 = vsel %vm508, %v907, %v915
        %v967 = vsel %vm508, %v909, %v925
        %v971 = vsel %vm508, %v935, %v945
        %v975 = vsel %vm508, %v950, %v955
        %v978 = vsel %vm508, %v960, 0
        %980 = vmatprep.subr.bf16.mxu0 0
        %981 = vmatpush1.bf16.msra.mxu0 %v963
        %982 = vmatprep.subr.bf16.mxu0 0
        %983 = vmatpush1.bf16.msra.mxu0 %v967
        %984 = vmatprep.subr.bf16.mxu0 0
        %985 = vmatpush1.bf16.msra.mxu0 %v971
        %986 = vmatprep.subr.bf16.mxu0 0
        %987 = vmatpush1.bf16.msra.mxu0 %v975
        %988 = vmatprep.subr.bf16.mxu0 0
        %989 = vmatpush1.bf16.msra.mxu0 %v978
        %990 = vmatprep.subr.bf16.mxu0 0
        %991 = vmatpush1.bf16.msra.mxu0 0
        %992 = vmatprep.subr.bf16.mxu0 0
        %993 = vmatpush1.bf16.msra.mxu0 0
        %994 = vmatprep.subr.bf16.mxu0 0
        %995 = vmatpush1.bf16.msra.mxu0 0
        %996 = vmatprep.subr.bf16.mxu0 0
        %997 = vmatpush1.bf16.msra.mxu0 0
        %998 = vmatprep.subr.bf16.mxu0 0
        %999 = vmatpush1.bf16.msra.mxu0 0
        %1000 = vmatprep.subr.bf16.mxu0 0
        %1001 = vmatpush1.bf16.msra.mxu0 0
        %1002 = vmatprep.subr.bf16.mxu0 0
        %1003 = vmatpush1.bf16.msra.mxu0 0
        %1004 = vmatprep.subr.bf16.mxu0 0
        %1005 = vmatpush1.bf16.msra.mxu0 0
        %1006 = vmatprep.subr.bf16.mxu0 0
        %1007 = vmatpush1.bf16.msra.mxu0 0
        %1008 = vmatprep.subr.bf16.mxu0 0
        %1009 = vmatpush1.bf16.msra.mxu0 0
        %1010 = vmatprep.subr.bf16.mxu0 0
        %1011 = vmatpush1.bf16.msra.mxu0 0
        %1012 = vmatprep.mubr.bf16.mxu0 0
        %1013 = vmatmul.mubr.bf16.gmra.mrb[0].mxu0 %v861
        %v1014 = vpop.f32.mrb[0].mxu0
        %v1015 = vadd.f32 %v858, %v1014
        %v1016 = vpop.f32.mrb[0].mxu0
        %v1017 = vpop.f32.mrb[0].mxu0
        %v1018 = vpop.f32.mrb[0].mxu0
        %1019 = vdwg.mxu0
        %1020 = vst [vmem:[#allocation6 + $0x8] sm:$0xff] %v1015
        %v1021 = vld [vmem:[#allocation6] sm:$0xff]
        %v1022 = vld [vmem:[#allocation6 + $0x8] sm:$0xff]
        %v1023 = vadd.f32 %v1021, %v1022
        %1024 = vadd.xlane.f32.xlu0 %v1023
        %v1025 = vpop.xlane.xlu0 %1024
        %v1026 = vmul.f32 %v1025, 0.00390625
        %v1027 = vld [vmem:[%s5] sm:$0xff]
        %v1028 = vmul.f32 %v1027, %v1026
        %vm1029 = vcmask 15360
        %v1030 = vsel %vm1029, %v1028, 0.0
        %v1031 = vrot.slane %v1030, 4
        %v1032 = vadd.f32 %v1030, %v1031
        %v1033 = vrot.slane %v1032, 2
        %v1034 = vadd.f32 %v1032, %v1033
        %v1035 = vrot.slane %v1034, 1
        %v1036 = vadd.f32 %v1034, %v1035
        %v1037 = vld [vmem:[%s6] sm:$0x1]
        %v1038 = vadd.f32 %v1036, %v1037
        %v1039 = vmax.f32 %v1038, 0.0
        %v1040 = vld [vmem:[%s7] sm:$0xff]
        %v1041 = vlaneseq
        %v1042 = vshrl.u32 %v1041, 7
        %v1043 = vsub.s32 0, %v1042
        %v1044 = vrot.slane %v1039, %v1043
        %v1045 = vmul.f32 %v1040, %v1044
        %v1046 = vsel %vm1029, %v1045, 0.0
        %1047 = vadd.xlane.f32.xlu0 %v1046
        %v1048 = vpop.xlane.xlu0 %1047
        %v1049 = vld [vmem:[%s8] sm:$0xff]
        %v1050 = vadd.f32 %v1048, %v1049
        %v1051 = vxor.u32 %v1050, 2147483648
        %v1052 = vmul.f32 %v1051, 1.442695
        %v1053 = vpow.pop %v1052
        %v1054 = vadd.f32 %v1053, 1.0
        %v1055 = vrcp.pop %v1054
        %v1056 = vmul.f32 1.0, %v1055
        %1058 = vset.pattern.permute.xlu0 0
        %1059 = vperm.xlu0 %1058, %v1056
        %v1060 = vpop.permute.xlu0 %1059
        %v1062 = vmul.f32 %v1060, %v1021
        %v1063 = vmul.f32 %v1060, %v1022
        %v1064 = vld [vmem:[%s330] sm:$0xff]
        %v1065 = vld [vmem:[%s330 + $0x8] sm:$0xff]
        %v1066 = vadd.f32 %v1062, %v1064
        %v1067 = vadd.f32 %v1063, %v1065
        %1068 = vst [vmem:[%s325] sm:$0xff] %v1066
        %1069 = vst [vmem:[%s325 + $0x8] sm:$0xff] %v1067
        %s1070 = sand.u32 %s225, 1
        %s1071 = scalar_lea.sflag [#allocation8], %s1070
        %s1072 = sand.u32 %s225, 1
        %s1073 = smul.addr %s1072, 16
        %s1074 = scalar_lea.vmem [#allocation7], %s1073
        // Predicated region
        $region57: #{tpu_custom_call.1} parent=55 // pred_check
          %p1075 = pneg %p235
        $region58: #{tpu_custom_call.1} parent=55 // pred_check_branch
          %1077 = sbr.rel (%p1075) target = $region60
        $region59: #{tpu_custom_call.1} parent=55 // pred_region
          %s1079 = ssub.s32 256, 256
          %1080 = vsyncadd %s1071, %s1079
          %s1081 = smul.addr %s23, 2
          %s1082 = smul.addr %s1081, 128
          %s1083 = scalar_lea.hbm %s9, %s1082
          %s1085 = sshll.u32 %s1074, 4
          %s1086 = int_to_ptr.vmem [resolvable:$true] %s1085
          %1088 = dma.vmem_to_hbm [thread:$0]  %s1086, 256, %s1083, %s1071
        $region60: #{tpu_custom_call.1} parent=55 // pred_fallthru
          _
      $region56: #{tpu_custom_call.1} parent=5 // pred_fallthru
        _
      %p1089 = scmp.le.s32.totalorder 2, %s18
      // Predicated region
      $region61: #{tpu_custom_call.1} parent=5 // pred_check
        %p1090 = pneg %p1089
      $region62: #{tpu_custom_call.1} parent=5 // pred_check_branch
        %1092 = sbr.rel (%p1090) target = $region64
      $region63: #{tpu_custom_call.1} parent=5 // pred_region
        %s1093 = ssub.s32 %s18, 2
        // Predicated region
        $region65: #{tpu_custom_call.1} parent=63 // pred_check
          %p1094 = pneg %p241
        $region66: #{tpu_custom_call.1} parent=63 // pred_check_branch
          %1096 = sbr.rel (%p1094) target = $region68
        $region67: #{tpu_custom_call.1} parent=63 // pred_region
          %s1097 = sand.u32 %s226, 1
          %s1098 = scalar_lea.sflag [#allocation8], %s1097
          %s1099 = sand.u32 %s226, 1
          %s1100 = smul.addr %s1099, 16
          %s1101 = scalar_lea.vmem [#allocation7], %s1100
          %1102 = dma.done %s1098, 256
        $region68: #{tpu_custom_call.1} parent=63 // pred_fallthru
          _
      $region64: #{tpu_custom_call.1} parent=5 // pred_fallthru
        _
    $region6: #{tpu_custom_call.1} parent=1 // loop_footer
      %s22 = sadd.s32 1, %s18
    $region7: #{tpu_custom_call.1} parent=1 // loop_footer_branch
      %17 = sbr.rel target = $region3
    $region8: #{tpu_custom_call.1} parent=1 // loop_exit
      _
    %1103 = vsyncpa [#allocation8], 1
    %s1104 = scalar_lea.sflag [#allocation8], 1
    %1105 = vsyncpa %s1104, 1

</llo_original>
